<compile_context>
chip_gen: v5e
topology: v5e:2x2
jax: 0.10.0
libtpu: 0.0.40
codegen_flags: <defaults>
</compile_context>

<pallas_src>
import jax
import jax.numpy as jnp
from jax import lax
from jax.experimental import pallas as pl
from jax.experimental.pallas import tpu as pltpu

BN_EPS = 1e-5
LANE = 128
SUB = 16  # bf16 sublane packing granularity


def _round_up(x, m):
    return ((x + m - 1) // m) * m


def _vmem_spec():
    return pl.BlockSpec(memory_space=pltpu.MemorySpace.VMEM)


def _physical_vmem_bytes():
    try:
        return int(pltpu.get_tpu_info().vmem_capacity_bytes)
    except Exception:
        return 64 << 20  # conservative (v7x per-TensorCore VMEM)


# ---------------------------------------------------------------------------
# Fused Pallas kernel (all layers + pooling + optional projection head)
# ---------------------------------------------------------------------------
def _make_fused_gconv_kernel(num_layers, project, n_real, n_pad, p_h,
                             stream_adj, tile_m):
    n_tiles = (n_pad // tile_m) if stream_adj else 1
    inv_n = 1.0 / float(n_real)

    def kernel(*refs):
        adj_ref, x_ref, pool_ref = refs[0], refs[1], refs[2]
        idx = 3
        layer_refs = []
        for _ in range(num_layers):
            layer_refs.append(refs[idx:idx + 6])
            idx += 6
        if project:
            pw1_ref, pb1_ref, pw2_ref, pb2_ref = refs[idx:idx + 4]
            idx += 4
        out_ref = refs[idx]
        idx += 1
        zcat_ref = refs[idx]            # [n_pad, L*p_h] bf16 scratch (pool slab)
        idx += 1
        if stream_adj:
            abuf_ref, sem_ref, hfull_ref = refs[idx:idx + 3]

        # Node-validity mask: padded rows are excluded from BN stats / zeroed.
        row_ids = lax.broadcasted_iota(jnp.int32, (n_pad, 1), 0)
        nmask = (row_ids < n_real).astype(jnp.float32)

        if not stream_adj:
            adj = adj_ref[...]          # bf16 [n_pad, n_pad]; resident, reused by all layers

        z_bf = x_ref[...]               # bf16 [n_pad, p_in] lane-padded node features

        for l, (w1_ref, b1_ref, w2_ref, b2_ref, g_ref, bt_ref) in enumerate(layer_refs):
            w1 = w1_ref[...]
            w2 = w2_ref[...]
            b1 = b1_ref[...]
            b2 = b2_ref[...]
            in_p = z_bf.shape[1]
            hid_p = w1.shape[1]

            if not stream_adj:
                # Associate the N^2 aggregation matmul with the smaller feature dim.
                if in_p <= hid_p:
                    h = jnp.dot(adj, z_bf, preferred_element_type=jnp.float32)
                    h = jnp.dot(h.astype(jnp.bfloat16), w1,
                                preferred_element_type=jnp.float32)
                else:
                    h = jnp.dot(z_bf, w1, preferred_element_type=jnp.float32)
                    h = jnp.dot(adj, h.astype(jnp.bfloat16),
                                preferred_element_type=jnp.float32)
                h = jnp.maximum(h + b1, 0.0)
                h = jnp.dot(h.astype(jnp.bfloat16), w2,
                            preferred_element_type=jnp.float32) + b2
                h = jnp.maximum(h, 0.0)
            else:
                # Stream double-buffered row tiles of A from HBM; features/weights
                # stay VMEM-resident. DMA of tile t+1 overlaps compute of tile t.
                if in_p <= hid_p:
                    rhs = z_bf                                           # (A@Z)@W1
                    post_w1 = True
                else:
                    rhs = jnp.dot(z_bf, w1,
                                  preferred_element_type=jnp.float32
                                  ).astype(jnp.bfloat16)                 # A@(Z@W1)
                    post_w1 = False

                def _fetch(t, slot):
                    start = pl.multiple_of(t * tile_m, tile_m)
                    pltpu.make_async_copy(adj_ref.at[pl.ds(start, tile_m), :],
                                          abuf_ref.at[slot],
                                          sem_ref.at[slot]).start()

                _fetch(0, 0)

                def _tile_body(t, carry):
                    slot = lax.rem(t, 2)
                    start = pl.multiple_of(t * tile_m, tile_m)
                    pltpu.make_async_copy(adj_ref.at[pl.ds(start, tile_m), :],
                                          abuf_ref.at[slot],
                                          sem_ref.at[slot]).wait()

                    @pl.when(t + 1 < n_tiles)
                    def _():
                        _fetch(t + 1, 1 - slot)

                    rows = abuf_ref[slot]                    # bf16 [tile_m, n_pad]
                    acc = jnp.dot(rows, rhs, preferred_element_type=jnp.float32)
                    if post_w1:
                        acc = jnp.dot(acc.astype(jnp.bfloat16), w1,
                                      preferred_element_type=jnp.float32)
                    acc = jnp.maximum(acc + b1, 0.0)
                    acc = jnp.dot(acc.astype(jnp.bfloat16), w2,
                                  preferred_element_type=jnp.float32) + b2
                    acc = jnp.maximum(acc, 0.0)
                    hfull_ref[pl.ds(start, tile_m), :] = acc
                    return carry

                lax.fori_loop(0, n_tiles, _tile_body, 0)
                h = hfull_ref[...]                           # f32 [n_pad, p_h]

            # BatchNorm1d: training-mode batch stats over REAL nodes, biased var (f32).
            mean = jnp.sum(h * nmask, axis=0, keepdims=True) * inv_n
            cen = h - mean
            var = jnp.sum(cen * cen * nmask, axis=0, keepdims=True) * inv_n
            zf = (cen * lax.rsqrt(var + BN_EPS) * g_ref[...] + bt_ref[...]) * nmask
            zf_bf = zf.astype(jnp.bfloat16)                  # single bf16 cast, reused
            zcat_ref[:, l * p_h:(l + 1) * p_h] = zf_bf       # column slab for pooling
            z_bf = zf_bf                                     # carried to next layer

        # Batched global_add_pool over all layers: one [G, n_pad] @ [n_pad, L*p_h].
        pooled = jnp.dot(pool_ref[...], zcat_ref[...],
                         preferred_element_type=jnp.float32)

        if project:
            acc = jnp.dot(pooled.astype(jnp.bfloat16), pw1_ref[...],
                          preferred_element_type=jnp.float32)
            acc = jnp.maximum(acc + pb1_ref[...], 0.0)
            out_ref[...] = jnp.dot(acc.astype(jnp.bfloat16), pw2_ref[...],
                                   preferred_element_type=jnp.float32) + pb2_ref[...]
        else:
            out_ref[...] = pooled

    return kernel


# ---------------------------------------------------------------------------
# Wrapper around the single pallas_call
# ---------------------------------------------------------------------------
def fused_gconv(params, adj_bf, x_bf, pool_bf, n_real, project, stream_adj, tile_m):
    num_layers = len(params["layers"])
    n_pad = adj_bf.shape[0]
    g = pool_bf.shape[0]
    p_h = params["layers"][0][0].shape[1]
    p_in = x_bf.shape[1]

    inputs = [adj_bf, x_bf, pool_bf]
    for layer in params["layers"]:
        inputs.extend(layer)
    if project:
        inputs.extend(params["project"])
        p_proj = params["project"][2].shape[1]
        out_shape = jax.ShapeDtypeStruct((g, p_proj), jnp.float32)
        out_elems = g * p_proj
    else:
        out_shape = jax.ShapeDtypeStruct((g, num_layers * p_h), jnp.float32)
        out_elems = g * num_layers * p_h

    scratch = [pltpu.VMEM((n_pad, num_layers * p_h), jnp.bfloat16)]   # pooling slab
    if stream_adj:
        scratch += [pltpu.VMEM((2, tile_m, n_pad), jnp.bfloat16),     # A row-tile dbuf
                    pltpu.SemaphoreType.DMA((2,)),
                    pltpu.VMEM((n_pad, p_h), jnp.float32)]            # pre-BN features

    in_specs = ([pl.BlockSpec(memory_space=pl.ANY) if stream_adj else _vmem_spec()]
                + [_vmem_spec()] * (len(inputs) - 1))

    # VMEM residency estimate (no artificial 32 MiB cap; sized to the device).
    weight_bytes = sum(int(a.size) * int(a.dtype.itemsize) for a in inputs[1:])
    resident = weight_bytes + 2 * n_pad * num_layers * p_h            # zcat slab
    resident += 4 * n_pad * max(p_in, p_h) * 3                        # f32 transients
    if stream_adj:
        resident += 2 * 2 * tile_m * n_pad + 4 * n_pad * p_h
    else:
        resident += 2 * n_pad * n_pad                                 # resident A
    cap = int(0.9 * _physical_vmem_bytes())
    vmem_limit = int(min(max(int(resident * 1.5), 16 << 20), cap))

    # Advisory cost estimate for XLA scheduling around the custom call.
    flops = 0
    dim_prev = p_in
    for _ in range(num_layers):
        flops += (2 * n_pad * n_pad * min(dim_prev, p_h)
                  + 2 * n_pad * dim_prev * p_h + 2 * n_pad * p_h * p_h)
        dim_prev = p_h
    flops += 2 * g * n_pad * num_layers * p_h
    if project:
        p_proj = params["project"][2].shape[1]
        flops += 2 * g * num_layers * p_h * p_proj + 2 * g * p_proj * p_proj
    adj_bytes = int(adj_bf.size) * 2
    bytes_accessed = weight_bytes + out_elems * 4
    bytes_accessed += adj_bytes * (num_layers if stream_adj else 1)

    fused = pl.pallas_call(
        _make_fused_gconv_kernel(num_layers, project, n_real, n_pad, p_h,
                                 stream_adj, tile_m),
        out_shape=out_shape,
        in_specs=in_specs,
        out_specs=_vmem_spec(),
        scratch_shapes=scratch,
        compiler_params=pltpu.CompilerParams(vmem_limit_bytes=vmem_limit),
        cost_estimate=pl.CostEstimate(flops=int(flops),
                                      transcendentals=int(num_layers * p_h),
                                      bytes_accessed=int(bytes_accessed)),
    )
    return fused(*inputs)


# ---------------------------------------------------------------------------
# Parameter init (lane-padded, MXU operands stored in bf16)
# ---------------------------------------------------------------------------
def _init_linear(key, fan_in, fan_out, pad_in, pad_out):
    kw, kb = jax.random.split(key)
    bound = 1.0 / (fan_in ** 0.5)
    w = jax.random.uniform(kw, (fan_in, fan_out), jnp.float32, -bound, bound)
    b = jax.random.uniform(kb, (fan_out,), jnp.float32, -bound, bound)
    w_p = jnp.zeros((pad_in, pad_out), jnp.float32).at[:fan_in, :fan_out].set(w)
    b_p = jnp.zeros((1, pad_out), jnp.float32).at[0, :fan_out].set(b)
    return w_p.astype(jnp.bfloat16), b_p   # weights bf16 (MXU), bias f32 (VPU)


def init_gconv_params(key, input_dim, hidden_dim, num_layers):
    p_in = _round_up(input_dim, LANE)
    p_h = _round_up(hidden_dim, LANE)
    proj_dim = hidden_dim * num_layers
    p_proj = _round_up(proj_dim, LANE)

    params = {"layers": [], "dims": (input_dim, hidden_dim, num_layers)}
    keys = jax.random.split(key, num_layers + 2)
    for i in range(num_layers):
        in_dim = input_dim if i == 0 else hidden_dim
        pin = p_in if i == 0 else p_h
        k1, k2 = jax.random.split(keys[i])
        w1, b1 = _init_linear(k1, in_dim, hidden_dim, pin, p_h)
        w2, b2 = _init_linear(k2, hidden_dim, hidden_dim, p_h, p_h)
        gamma = jnp.ones((1, p_h), jnp.float32)   # BatchNorm1d defaults
        beta = jnp.zeros((1, p_h), jnp.float32)
        params["layers"].append((w1, b1, w2, b2, gamma, beta))

    # Projection head: W1 stored as one flat [L*p_h, p_proj] slab whose real row
    # blocks sit at offsets l*p_h, so the kernel does a single wide matmul against
    # the [G, L*p_h] pooled features (no in-kernel concat, no per-layer dots).
    kw1, kb1 = jax.random.split(keys[num_layers])
    bound = 1.0 / (proj_dim ** 0.5)
    pw1 = jax.random.uniform(kw1, (proj_dim, proj_dim), jnp.float32, -bound, bound)
    pb1 = jax.random.uniform(kb1, (proj_dim,), jnp.float32, -bound, bound)
    pw1_pad = jnp.zeros((num_layers * p_h, p_proj), jnp.float32)
    for l in range(num_layers):
        blk = pw1[l * hidden_dim:(l + 1) * hidden_dim, :]
        pw1_pad = pw1_pad.at[l * p_h:l * p_h + hidden_dim, :proj_dim].set(blk)
    pb1_p = jnp.zeros((1, p_proj), jnp.float32).at[0, :proj_dim].set(pb1)
    pw2, pb2 = _init_linear(keys[num_layers + 1], proj_dim, proj_dim, p_proj, p_proj)
    params["project"] = (pw1_pad.astype(jnp.bfloat16), pb1_p, pw2, pb2)
    return params


# ---------------------------------------------------------------------------
# Forward (plain-JAX glue: dense operands, padding, un-padding)
# ---------------------------------------------------------------------------
def _build_graph_operands(params, x, edge_index, batch, num_graphs, n_pad):
    input_dim = params["dims"][0]
    n = x.shape[0]
    p_in = _round_up(input_dim, LANE)
    src, dst = edge_index[0], edge_index[1]
    # out[i] = sum over edges (src -> dst=i) of x[src]  ->  A[i, j] = #edges j->i
    adj = jnp.zeros((n_pad, n_pad), jnp.float32).at[dst, src].add(1.0)
    diag = jnp.arange(n)
    adj = adj.at[diag, diag].add(1.0)          # GIN eps=0: A + I (real nodes only)
    adj_bf = adj.astype(jnp.bfloat16)          # exact for integer counts <= 256
    batch_pad = jnp.full((n_pad,), -1, jnp.int32).at[:n].set(batch.astype(jnp.int32))
    pool = (batch_pad[None, :] == jnp.arange(num_graphs)[:, None]).astype(jnp.bfloat16)
    x_pad = jnp.zeros((n_pad, p_in), jnp.float32).at[:n, :x.shape[1]].set(x)
    return adj_bf, x_pad.astype(jnp.bfloat16), pool


def gconv_forward(params, x, edge_index, batch, num_graphs, project=False,
                  stream_adj=None, tile_m=256):
    _, hidden_dim, num_layers = params["dims"]
    n = x.shape[0]
    p_h = _round_up(hidden_dim, LANE)

    if stream_adj is None:
        # Keep A VMEM-resident (DMA'd once, reused by all L layers) whenever it
        # fits this generation's budget; otherwise stream row tiles from HBM.
        cap = int(0.9 * _physical_vmem_bytes())
        resident_est = (2 * _round_up(n, SUB) ** 2
                        + 8 * _round_up(n, SUB) * p_h * (num_layers + 3))
        stream_adj = resident_est > int(0.7 * cap)

    if stream_adj:
        tile_m = max(SUB, min(tile_m, _round_up(n, LANE)))
        # tile_m must be bf16-sublane aligned and compatible with 128-row padding.
        assert tile_m % SUB == 0 and (LANE % tile_m == 0 or tile_m % LANE == 0)
        n_pad = _round_up(_round_up(n, LANE), tile_m)
    else:
        n_pad = _round_up(n, SUB)

    adj_bf, x_pad, pool = _build_graph_operands(params, x, edge_index, batch,
                                                num_graphs, n_pad)
    out = fused_gconv(params, adj_bf, x_pad, pool, n, project, stream_adj, tile_m)
    if project:
        return out[:, :hidden_dim * num_layers]
    # Gather the real hidden_dim columns of each 128-wide layer slab (tiny copy;
    # a pure slice when hidden_dim is a multiple of 128).
    return jnp.concatenate(
        [out[:, l * p_h: l * p_h + hidden_dim] for l in range(num_layers)], axis=1)


# ---------------------------------------------------------------------------
# Pure-JAX reference (mirrors padding + bf16 MXU boundaries) for validation
# ---------------------------------------------------------------------------
def gconv_reference(params, x, edge_index, batch, num_graphs, project=False):
    _, hidden_dim, num_layers = params["dims"]
    n = x.shape[0]
    p_h = _round_up(hidden_dim, LANE)
    n_pad = _round_up(n, SUB)
    adj, z_bf, pool = _build_graph_operands(params, x, edge_index, batch,
                                            num_graphs, n_pad)
    nmask = (jnp.arange(n_pad)[:, None] < n).astype(jnp.float32)
    inv_n = 1.0 / float(n)
    slabs = []
    for (w1, b1, w2, b2, gamma, beta) in params["layers"]:
        if z_bf.shape[1] <= w1.shape[1]:
            h = jnp.dot(adj, z_bf, preferred_element_type=jnp.float32)
            h = jnp.dot(h.astype(jnp.bfloat16), w1, preferred_element_type=jnp.float32)
        else:
            h = jnp.dot(z_bf, w1, preferred_element_type=jnp.float32)
            h = jnp.dot(adj, h.astype(jnp.bfloat16), preferred_element_type=jnp.float32)
        h = jnp.maximum(h + b1, 0.0)
        h = jnp.dot(h.astype(jnp.bfloat16), w2, preferred_element_type=jnp.float32) + b2
        h = jnp.maximum(h, 0.0)
        mean = jnp.sum(h * nmask, axis=0, keepdims=True) * inv_n
        cen = h - mean
        var = jnp.sum(cen * cen * nmask, axis=0, keepdims=True) * inv_n
        zf = (cen * jax.lax.rsqrt(var + BN_EPS) * gamma + beta) * nmask
        z_bf = zf.astype(jnp.bfloat16)
        slabs.append(z_bf)
    zcat = jnp.concatenate(slabs, axis=1)                       # [n_pad, L*p_h]
    pooled = jnp.dot(pool, zcat, preferred_element_type=jnp.float32)
    if project:
        pw1, pb1, pw2, pb2 = params["project"]
        acc = jnp.dot(pooled.astype(jnp.bfloat16), pw1, preferred_element_type=jnp.float32)
        acc = jnp.maximum(acc + pb1, 0.0)
        out = jnp.dot(acc.astype(jnp.bfloat16), pw2, preferred_element_type=jnp.float32) + pb2
        return out[:, :hidden_dim * num_layers]
    return jnp.concatenate(
        [pooled[:, l * p_h: l * p_h + hidden_dim] for l in range(num_layers)], axis=1)


# ---------------------------------------------------------------------------
if __name__ == "__main__":
    key = jax.random.PRNGKey(0)
    num_nodes, input_dim, hidden_dim, num_layers, num_graphs = 16, 16, 32, 3, 2

    kx, kp = jax.random.split(key)
    x = jax.random.normal(kx, (num_nodes, input_dim), jnp.float32)

    # Deterministic edge_index: bidirectional ring inside each of the 2 graphs
    # (graph 0 = nodes 0..7, graph 1 = nodes 8..15).
    ring = jnp.arange(8, dtype=jnp.int32)
    nxt = (ring + 1) % 8
    src = jnp.concatenate([ring, nxt, ring + 8, nxt + 8])
    dst = jnp.concatenate([nxt, ring, nxt + 8, ring + 8])
    edge_index = jnp.stack([src, dst]).astype(jnp.int32)   # [2, E]
    batch = jnp.concatenate([jnp.zeros(8, jnp.int32), jnp.ones(8, jnp.int32)])

    params = init_gconv_params(kp, input_dim, hidden_dim, num_layers)

    # Resident-adjacency path (A DMA'd once, reused by every layer).
    g_no_proj = gconv_forward(params, x, edge_index, batch, num_graphs,
                              project=False, stream_adj=False)
    g_proj = gconv_forward(params, x, edge_index, batch, num_graphs,
                           project=True, stream_adj=False)
    # Streamed-adjacency path (A in HBM, double-buffered row-tile DMAs), forced at
    # this small size purely to validate the large-N code path (2 tiles of 64 rows).
    g_stream = gconv_forward(params, x, edge_index, batch, num_graphs,
                             project=False, stream_adj=True, tile_m=64)
    g_stream_p = gconv_forward(params, x, edge_index, batch, num_graphs,
                               project=True, stream_adj=True, tile_m=64)
    jax.block_until_ready((g_no_proj, g_proj, g_stream, g_stream_p))

    assert g_no_proj.shape == (num_graphs, hidden_dim * num_layers)
    assert g_proj.shape == (num_graphs, hidden_dim * num_layers)
    assert g_stream.shape == (num_graphs, hidden_dim * num_layers)
    assert g_stream_p.shape == (num_graphs, hidden_dim * num_layers)
    for arr in (g_no_proj, g_proj, g_stream, g_stream_p):
        assert jnp.all(jnp.isfinite(arr))

    # Cross-check against a pure-JAX reference using the same bf16 MXU boundaries.
    r_no_proj = gconv_reference(params, x, edge_index, batch, num_graphs, project=False)
    r_proj = gconv_reference(params, x, edge_index, batch, num_graphs, project=True)
    assert jnp.allclose(g_no_proj, r_no_proj, rtol=5e-3, atol=5e-3)
    assert jnp.allclose(g_proj, r_proj, rtol=5e-3, atol=5e-3)
    assert jnp.allclose(g_stream, r_no_proj, rtol=5e-3, atol=5e-3)
    assert jnp.allclose(g_stream_p, r_proj, rtol=5e-3, atol=5e-3)

    print("KERNEL_OK")
</pallas_src>

<mosaic_0001>
module attributes {stable_mosaic.version = 11 : i64} {
  func.func @kernel(%arg0: memref<16x16xbf16, #tpu.memory_space<vmem>>, %arg1: memref<16x128xbf16, #tpu.memory_space<vmem>>, %arg2: memref<2x16xbf16, #tpu.memory_space<vmem>>, %arg3: memref<128x128xbf16, #tpu.memory_space<vmem>>, %arg4: memref<1x128xf32, #tpu.memory_space<vmem>>, %arg5: memref<128x128xbf16, #tpu.memory_space<vmem>>, %arg6: memref<1x128xf32, #tpu.memory_space<vmem>>, %arg7: memref<1x128xf32, #tpu.memory_space<vmem>>, %arg8: memref<1x128xf32, #tpu.memory_space<vmem>>, %arg9: memref<128x128xbf16, #tpu.memory_space<vmem>>, %arg10: memref<1x128xf32, #tpu.memory_space<vmem>>, %arg11: memref<128x128xbf16, #tpu.memory_space<vmem>>, %arg12: memref<1x128xf32, #tpu.memory_space<vmem>>, %arg13: memref<1x128xf32, #tpu.memory_space<vmem>>, %arg14: memref<1x128xf32, #tpu.memory_space<vmem>>, %arg15: memref<128x128xbf16, #tpu.memory_space<vmem>>, %arg16: memref<1x128xf32, #tpu.memory_space<vmem>>, %arg17: memref<128x128xbf16, #tpu.memory_space<vmem>>, %arg18: memref<1x128xf32, #tpu.memory_space<vmem>>, %arg19: memref<1x128xf32, #tpu.memory_space<vmem>>, %arg20: memref<1x128xf32, #tpu.memory_space<vmem>>, %arg21: memref<2x384xf32, #tpu.memory_space<vmem>>, %arg22: memref<16x384xbf16, #tpu.memory_space<vmem>>) attributes {dimension_semantics = [], scalar_prefetch = 0 : i64, scratch_operands = 1 : i64, tpu.core_type = #tpu.core_type<tc>} {
    %0 = tpu.iota {dimensions = array<i32: 0>} : vector<16x1xi32>
    %c16_i32 = arith.constant 16 : i32
    %1 = vector.broadcast %c16_i32 : i32 to vector<16x1xi32>
    %2 = arith.cmpi slt, %0, %1 : vector<16x1xi32>
    %3 = arith.extui %2 : vector<16x1xi1> to vector<16x1xi32>
    %4 = arith.sitofp %3 : vector<16x1xi32> to vector<16x1xf32>
    %c0 = arith.constant 0 : index
    %c0_0 = arith.constant 0 : index
    %5 = vector.load %arg0[%c0, %c0_0] : memref<16x16xbf16, #tpu.memory_space<vmem>>, vector<16x16xbf16>
    %c0_1 = arith.constant 0 : index
    %c0_2 = arith.constant 0 : index
    %6 = vector.load %arg1[%c0_1, %c0_2] : memref<16x128xbf16, #tpu.memory_space<vmem>>, vector<16x128xbf16>
    %c0_3 = arith.constant 0 : index
    %c0_4 = arith.constant 0 : index
    %7 = vector.load %arg3[%c0_3, %c0_4] : memref<128x128xbf16, #tpu.memory_space<vmem>>, vector<128x128xbf16>
    %c0_5 = arith.constant 0 : index
    %c0_6 = arith.constant 0 : index
    %8 = vector.load %arg5[%c0_5, %c0_6] : memref<128x128xbf16, #tpu.memory_space<vmem>>, vector<128x128xbf16>
    %c0_7 = arith.constant 0 : index
    %c0_8 = arith.constant 0 : index
    %9 = vector.load %arg4[%c0_7, %c0_8] : memref<1x128xf32, #tpu.memory_space<vmem>>, vector<1x128xf32>
    %c0_9 = arith.constant 0 : index
    %c0_10 = arith.constant 0 : index
    %10 = vector.load %arg6[%c0_9, %c0_10] : memref<1x128xf32, #tpu.memory_space<vmem>>, vector<1x128xf32>
    %cst = arith.constant dense<0.000000e+00> : vector<16x128xf32>
    %11 = tpu.matmul %5, %6, %cst {dimension_numbers = #tpu.dot_dimension_numbers<[1], [0], [0], [1], [0, 0, 1, 1], [], []>} : vector<16x16xbf16>, vector<16x128xbf16>, vector<16x128xf32> -> vector<16x128xf32>
    %12 = arith.truncf %11 : vector<16x128xf32> to vector<16x128xbf16>
    %cst_11 = arith.constant dense<0.000000e+00> : vector<16x128xf32>
    %13 = tpu.matmul %12, %7, %cst_11 {dimension_numbers = #tpu.dot_dimension_numbers<[1], [0], [0], [1], [0, 0, 1, 1], [], []>} : vector<16x128xbf16>, vector<128x128xbf16>, vector<16x128xf32> -> vector<16x128xf32>
    %14 = vector.broadcast %9 : vector<1x128xf32> to vector<16x128xf32>
    %15 = arith.addf %13, %14 : vector<16x128xf32>
    %cst_12 = arith.constant 0.000000e+00 : f32
    %16 = vector.broadcast %cst_12 : f32 to vector<16x128xf32>
    %17 = arith.maximumf %15, %16 : vector<16x128xf32>
    %18 = arith.truncf %17 : vector<16x128xf32> to vector<16x128xbf16>
    %cst_13 = arith.constant dense<0.000000e+00> : vector<16x128xf32>
    %19 = tpu.matmul %18, %8, %cst_13 {dimension_numbers = #tpu.dot_dimension_numbers<[1], [0], [0], [1], [0, 0, 1, 1], [], []>} : vector<16x128xbf16>, vector<128x128xbf16>, vector<16x128xf32> -> vector<16x128xf32>
    %20 = vector.broadcast %10 : vector<1x128xf32> to vector<16x128xf32>
    %21 = arith.addf %19, %20 : vector<16x128xf32>
    %cst_14 = arith.constant 0.000000e+00 : f32
    %22 = vector.broadcast %cst_14 : f32 to vector<16x128xf32>
    %23 = arith.maximumf %21, %22 : vector<16x128xf32>
    %24 = vector.broadcast %4 : vector<16x1xf32> to vector<16x128xf32>
    %25 = arith.mulf %23, %24 : vector<16x128xf32>
    %cst_15 = arith.constant dense<0.000000e+00> : vector<128xf32>
    %26 = vector.multi_reduction <add>, %25, %cst_15 [0] : vector<16x128xf32> to vector<128xf32>
    %27 = vector.shape_cast %26 : vector<128xf32> to vector<1x128xf32>
    %cst_16 = arith.constant 6.250000e-02 : f32
    %28 = vector.broadcast %cst_16 : f32 to vector<1x128xf32>
    %29 = arith.mulf %27, %28 : vector<1x128xf32>
    %30 = vector.broadcast %29 : vector<1x128xf32> to vector<16x128xf32>
    %31 = arith.subf %23, %30 : vector<16x128xf32>
    %32 = arith.mulf %31, %31 : vector<16x128xf32>
    %33 = vector.broadcast %4 : vector<16x1xf32> to vector<16x128xf32>
    %34 = arith.mulf %32, %33 : vector<16x128xf32>
    %cst_17 = arith.constant dense<0.000000e+00> : vector<128xf32>
    %35 = vector.multi_reduction <add>, %34, %cst_17 [0] : vector<16x128xf32> to vector<128xf32>
    %36 = vector.shape_cast %35 : vector<128xf32> to vector<1x128xf32>
    %cst_18 = arith.constant 6.250000e-02 : f32
    %37 = vector.broadcast %cst_18 : f32 to vector<1x128xf32>
    %38 = arith.mulf %36, %37 : vector<1x128xf32>
    %cst_19 = arith.constant 9.99999974E-6 : f32
    %39 = vector.broadcast %cst_19 : f32 to vector<1x128xf32>
    %40 = arith.addf %38, %39 : vector<1x128xf32>
    %41 = math.rsqrt %40 : vector<1x128xf32>
    %42 = vector.broadcast %41 : vector<1x128xf32> to vector<16x128xf32>
    %43 = arith.mulf %31, %42 : vector<16x128xf32>
    %c0_20 = arith.constant 0 : index
    %c0_21 = arith.constant 0 : index
    %44 = vector.load %arg7[%c0_20, %c0_21] : memref<1x128xf32, #tpu.memory_space<vmem>>, vector<1x128xf32>
    %45 = vector.broadcast %44 : vector<1x128xf32> to vector<16x128xf32>
    %46 = arith.mulf %43, %45 : vector<16x128xf32>
    %c0_22 = arith.constant 0 : index
    %c0_23 = arith.constant 0 : index
    %47 = vector.load %arg8[%c0_22, %c0_23] : memref<1x128xf32, #tpu.memory_space<vmem>>, vector<1x128xf32>
    %48 = vector.broadcast %47 : vector<1x128xf32> to vector<16x128xf32>
    %49 = arith.addf %46, %48 : vector<16x128xf32>
    %50 = vector.broadcast %4 : vector<16x1xf32> to vector<16x128xf32>
    %51 = arith.mulf %49, %50 : vector<16x128xf32>
    %52 = arith.truncf %51 : vector<16x128xf32> to vector<16x128xbf16>
    %c0_24 = arith.constant 0 : index
    %c0_25 = arith.constant 0 : index
    %53 = vector.load %arg22[%c0_24, %c0_25] : memref<16x384xbf16, #tpu.memory_space<vmem>>, vector<16x128xbf16>
    tpu.vector_store %arg22[%c0_24, %c0_25], %52 {strides = array<i32>} : memref<16x384xbf16, #tpu.memory_space<vmem>>, vector<16x128xbf16>,
    %c0_26 = arith.constant 0 : index
    %c0_27 = arith.constant 0 : index
    %54 = vector.load %arg9[%c0_26, %c0_27] : memref<128x128xbf16, #tpu.memory_space<vmem>>, vector<128x128xbf16>
    %c0_28 = arith.constant 0 : index
    %c0_29 = arith.constant 0 : index
    %55 = vector.load %arg11[%c0_28, %c0_29] : memref<128x128xbf16, #tpu.memory_space<vmem>>, vector<128x128xbf16>
    %c0_30 = arith.constant 0 : index
    %c0_31 = arith.constant 0 : index
    %56 = vector.load %arg10[%c0_30, %c0_31] : memref<1x128xf32, #tpu.memory_space<vmem>>, vector<1x128xf32>
    %c0_32 = arith.constant 0 : index
    %c0_33 = arith.constant 0 : index
    %57 = vector.load %arg12[%c0_32, %c0_33] : memref<1x128xf32, #tpu.memory_space<vmem>>, vector<1x128xf32>
    %cst_34 = arith.constant dense<0.000000e+00> : vector<16x128xf32>
    %58 = tpu.matmul %5, %52, %cst_34 {dimension_numbers = #tpu.dot_dimension_numbers<[1], [0], [0], [1], [0, 0, 1, 1], [], []>} : vector<16x16xbf16>, vector<16x128xbf16>, vector<16x128xf32> -> vector<16x128xf32>
    %59 = arith.truncf %58 : vector<16x128xf32> to vector<16x128xbf16>
    %cst_35 = arith.constant dense<0.000000e+00> : vector<16x128xf32>
    %60 = tpu.matmul %59, %54, %cst_35 {dimension_numbers = #tpu.dot_dimension_numbers<[1], [0], [0], [1], [0, 0, 1, 1], [], []>} : vector<16x128xbf16>, vector<128x128xbf16>, vector<16x128xf32> -> vector<16x128xf32>
    %61 = vector.broadcast %56 : vector<1x128xf32> to vector<16x128xf32>
    %62 = arith.addf %60, %61 : vector<16x128xf32>
    %cst_36 = arith.constant 0.000000e+00 : f32
    %63 = vector.broadcast %cst_36 : f32 to vector<16x128xf32>
    %64 = arith.maximumf %62, %63 : vector<16x128xf32>
    %65 = arith.truncf %64 : vector<16x128xf32> to vector<16x128xbf16>
    %cst_37 = arith.constant dense<0.000000e+00> : vector<16x128xf32>
    %66 = tpu.matmul %65, %55, %cst_37 {dimension_numbers = #tpu.dot_dimension_numbers<[1], [0], [0], [1], [0, 0, 1, 1], [], []>} : vector<16x128xbf16>, vector<128x128xbf16>, vector<16x128xf32> -> vector<16x128xf32>
    %67 = vector.broadcast %57 : vector<1x128xf32> to vector<16x128xf32>
    %68 = arith.addf %66, %67 : vector<16x128xf32>
    %cst_38 = arith.constant 0.000000e+00 : f32
    %69 = vector.broadcast %cst_38 : f32 to vector<16x128xf32>
    %70 = arith.maximumf %68, %69 : vector<16x128xf32>
    %71 = vector.broadcast %4 : vector<16x1xf32> to vector<16x128xf32>
    %72 = arith.mulf %70, %71 : vector<16x128xf32>
    %cst_39 = arith.constant dense<0.000000e+00> : vector<128xf32>
    %73 = vector.multi_reduction <add>, %72, %cst_39 [0] : vector<16x128xf32> to vector<128xf32>
    %74 = vector.shape_cast %73 : vector<128xf32> to vector<1x128xf32>
    %cst_40 = arith.constant 6.250000e-02 : f32
    %75 = vector.broadcast %cst_40 : f32 to vector<1x128xf32>
    %76 = arith.mulf %74, %75 : vector<1x128xf32>
    %77 = vector.broadcast %76 : vector<1x128xf32> to vector<16x128xf32>
    %78 = arith.subf %70, %77 : vector<16x128xf32>
    %79 = arith.mulf %78, %78 : vector<16x128xf32>
    %80 = vector.broadcast %4 : vector<16x1xf32> to vector<16x128xf32>
    %81 = arith.mulf %79, %80 : vector<16x128xf32>
    %cst_41 = arith.constant dense<0.000000e+00> : vector<128xf32>
    %82 = vector.multi_reduction <add>, %81, %cst_41 [0] : vector<16x128xf32> to vector<128xf32>
    %83 = vector.shape_cast %82 : vector<128xf32> to vector<1x128xf32>
    %cst_42 = arith.constant 6.250000e-02 : f32
    %84 = vector.broadcast %cst_42 : f32 to vector<1x128xf32>
    %85 = arith.mulf %83, %84 : vector<1x128xf32>
    %cst_43 = arith.constant 9.99999974E-6 : f32
    %86 = vector.broadcast %cst_43 : f32 to vector<1x128xf32>
    %87 = arith.addf %85, %86 : vector<1x128xf32>
    %88 = math.rsqrt %87 : vector<1x128xf32>
    %89 = vector.broadcast %88 : vector<1x128xf32> to vector<16x128xf32>
    %90 = arith.mulf %78, %89 : vector<16x128xf32>
    %c0_44 = arith.constant 0 : index
    %c0_45 = arith.constant 0 : index
    %91 = vector.load %arg13[%c0_44, %c0_45] : memref<1x128xf32, #tpu.memory_space<vmem>>, vector<1x128xf32>
    %92 = vector.broadcast %91 : vector<1x128xf32> to vector<16x128xf32>
    %93 = arith.mulf %90, %92 : vector<16x128xf32>
    %c0_46 = arith.constant 0 : index
    %c0_47 = arith.constant 0 : index
    %94 = vector.load %arg14[%c0_46, %c0_47] : memref<1x128xf32, #tpu.memory_space<vmem>>, vector<1x128xf32>
    %95 = vector.broadcast %94 : vector<1x128xf32> to vector<16x128xf32>
    %96 = arith.addf %93, %95 : vector<16x128xf32>
    %97 = vector.broadcast %4 : vector<16x1xf32> to vector<16x128xf32>
    %98 = arith.mulf %96, %97 : vector<16x128xf32>
    %99 = arith.truncf %98 : vector<16x128xf32> to vector<16x128xbf16>
    %c0_48 = arith.constant 0 : index
    %c128 = arith.constant 128 : index
    %100 = vector.load %arg22[%c0_48, %c128] : memref<16x384xbf16, #tpu.memory_space<vmem>>, vector<16x128xbf16>
    tpu.vector_store %arg22[%c0_48, %c128], %99 {strides = array<i32>} : memref<16x384xbf16, #tpu.memory_space<vmem>>, vector<16x128xbf16>,
    %c0_49 = arith.constant 0 : index
    %c0_50 = arith.constant 0 : index
    %101 = vector.load %arg15[%c0_49, %c0_50] : memref<128x128xbf16, #tpu.memory_space<vmem>>, vector<128x128xbf16>
    %c0_51 = arith.constant 0 : index
    %c0_52 = arith.constant 0 : index
    %102 = vector.load %arg17[%c0_51, %c0_52] : memref<128x128xbf16, #tpu.memory_space<vmem>>, vector<128x128xbf16>
    %c0_53 = arith.constant 0 : index
    %c0_54 = arith.constant 0 : index
    %103 = vector.load %arg16[%c0_53, %c0_54] : memref<1x128xf32, #tpu.memory_space<vmem>>, vector<1x128xf32>
    %c0_55 = arith.constant 0 : index
    %c0_56 = arith.constant 0 : index
    %104 = vector.load %arg18[%c0_55, %c0_56] : memref<1x128xf32, #tpu.memory_space<vmem>>, vector<1x128xf32>
    %cst_57 = arith.constant dense<0.000000e+00> : vector<16x128xf32>
    %105 = tpu.matmul %5, %99, %cst_57 {dimension_numbers = #tpu.dot_dimension_numbers<[1], [0], [0], [1], [0, 0, 1, 1], [], []>} : vector<16x16xbf16>, vector<16x128xbf16>, vector<16x128xf32> -> vector<16x128xf32>
    %106 = arith.truncf %105 : vector<16x128xf32> to vector<16x128xbf16>
    %cst_58 = arith.constant dense<0.000000e+00> : vector<16x128xf32>
    %107 = tpu.matmul %106, %101, %cst_58 {dimension_numbers = #tpu.dot_dimension_numbers<[1], [0], [0], [1], [0, 0, 1, 1], [], []>} : vector<16x128xbf16>, vector<128x128xbf16>, vector<16x128xf32> -> vector<16x128xf32>
    %108 = vector.broadcast %103 : vector<1x128xf32> to vector<16x128xf32>
    %109 = arith.addf %107, %108 : vector<16x128xf32>
    %cst_59 = arith.constant 0.000000e+00 : f32
    %110 = vector.broadcast %cst_59 : f32 to vector<16x128xf32>
    %111 = arith.maximumf %109, %110 : vector<16x128xf32>
    %112 = arith.truncf %111 : vector<16x128xf32> to vector<16x128xbf16>
    %cst_60 = arith.constant dense<0.000000e+00> : vector<16x128xf32>
    %113 = tpu.matmul %112, %102, %cst_60 {dimension_numbers = #tpu.dot_dimension_numbers<[1], [0], [0], [1], [0, 0, 1, 1], [], []>} : vector<16x128xbf16>, vector<128x128xbf16>, vector<16x128xf32> -> vector<16x128xf32>
    %114 = vector.broadcast %104 : vector<1x128xf32> to vector<16x128xf32>
    %115 = arith.addf %113, %114 : vector<16x128xf32>
    %cst_61 = arith.constant 0.000000e+00 : f32
    %116 = vector.broadcast %cst_61 : f32 to vector<16x128xf32>
    %117 = arith.maximumf %115, %116 : vector<16x128xf32>
    %118 = vector.broadcast %4 : vector<16x1xf32> to vector<16x128xf32>
    %119 = arith.mulf %117, %118 : vector<16x128xf32>
    %cst_62 = arith.constant dense<0.000000e+00> : vector<128xf32>
    %120 = vector.multi_reduction <add>, %119, %cst_62 [0] : vector<16x128xf32> to vector<128xf32>
    %121 = vector.shape_cast %120 : vector<128xf32> to vector<1x128xf32>
    %cst_63 = arith.constant 6.250000e-02 : f32
    %122 = vector.broadcast %cst_63 : f32 to vector<1x128xf32>
    %123 = arith.mulf %121, %122 : vector<1x128xf32>
    %124 = vector.broadcast %123 : vector<1x128xf32> to vector<16x128xf32>
    %125 = arith.subf %117, %124 : vector<16x128xf32>
    %126 = arith.mulf %125, %125 : vector<16x128xf32>
    %127 = vector.broadcast %4 : vector<16x1xf32> to vector<16x128xf32>
    %128 = arith.mulf %126, %127 : vector<16x128xf32>
    %cst_64 = arith.constant dense<0.000000e+00> : vector<128xf32>
    %129 = vector.multi_reduction <add>, %128, %cst_64 [0] : vector<16x128xf32> to vector<128xf32>
    %130 = vector.shape_cast %129 : vector<128xf32> to vector<1x128xf32>
    %cst_65 = arith.constant 6.250000e-02 : f32
    %131 = vector.broadcast %cst_65 : f32 to vector<1x128xf32>
    %132 = arith.mulf %130, %131 : vector<1x128xf32>
    %cst_66 = arith.constant 9.99999974E-6 : f32
    %133 = vector.broadcast %cst_66 : f32 to vector<1x128xf32>
    %134 = arith.addf %132, %133 : vector<1x128xf32>
    %135 = math.rsqrt %134 : vector<1x128xf32>
    %136 = vector.broadcast %135 : vector<1x128xf32> to vector<16x128xf32>
    %137 = arith.mulf %125, %136 : vector<16x128xf32>
    %c0_67 = arith.constant 0 : index
    %c0_68 = arith.constant 0 : index
    %138 = vector.load %arg19[%c0_67, %c0_68] : memref<1x128xf32, #tpu.memory_space<vmem>>, vector<1x128xf32>
    %139 = vector.broadcast %138 : vector<1x128xf32> to vector<16x128xf32>
    %140 = arith.mulf %137, %139 : vector<16x128xf32>
    %c0_69 = arith.constant 0 : index
    %c0_70 = arith.constant 0 : index
    %141 = vector.load %arg20[%c0_69, %c0_70] : memref<1x128xf32, #tpu.memory_space<vmem>>, vector<1x128xf32>
    %142 = vector.broadcast %141 : vector<1x128xf32> to vector<16x128xf32>
    %143 = arith.addf %140, %142 : vector<16x128xf32>
    %144 = vector.broadcast %4 : vector<16x1xf32> to vector<16x128xf32>
    %145 = arith.mulf %143, %144 : vector<16x128xf32>
    %146 = arith.truncf %145 : vector<16x128xf32> to vector<16x128xbf16>
    %c0_71 = arith.constant 0 : index
    %c256 = arith.constant 256 : index
    %147 = vector.load %arg22[%c0_71, %c256] : memref<16x384xbf16, #tpu.memory_space<vmem>>, vector<16x128xbf16>
    tpu.vector_store %arg22[%c0_71, %c256], %146 {strides = array<i32>} : memref<16x384xbf16, #tpu.memory_space<vmem>>, vector<16x128xbf16>,
    %c0_72 = arith.constant 0 : index
    %c0_73 = arith.constant 0 : index
    %148 = vector.load %arg2[%c0_72, %c0_73] : memref<2x16xbf16, #tpu.memory_space<vmem>>, vector<2x16xbf16>
    %c0_74 = arith.constant 0 : index
    %c0_75 = arith.constant 0 : index
    %149 = vector.load %arg22[%c0_74, %c0_75] : memref<16x384xbf16, #tpu.memory_space<vmem>>, vector<16x384xbf16>
    %cst_76 = arith.constant dense<0.000000e+00> : vector<2x384xf32>
    %150 = tpu.matmul %148, %149, %cst_76 {dimension_numbers = #tpu.dot_dimension_numbers<[1], [0], [0], [1], [0, 0, 1, 1], [], []>} : vector<2x16xbf16>, vector<16x384xbf16>, vector<2x384xf32> -> vector<2x384xf32>
    %c0_77 = arith.constant 0 : index
    %c0_78 = arith.constant 0 : index
    %151 = vector.load %arg21[%c0_77, %c0_78] : memref<2x384xf32, #tpu.memory_space<vmem>>, vector<2x384xf32>
    tpu.vector_store %arg21[%c0_77, %c0_78], %150 {strides = array<i32>} : memref<2x384xf32, #tpu.memory_space<vmem>>, vector<2x384xf32>,
    return
  }
}

</mosaic_0001>

<llo_original>
// kernel: tpu_custom_call.1
$region0: #{tpu_custom_call.1}
  #allocation0 [shape = 'u32[]', space=smem, size = 0x4, offset = 0x4, fixed_abs, tag = 'smem constant byte address 0x4 - core index']
  #allocation1 [shape = 'u32[72,128]{1,0:T(1,128)}', space=vmem, size = 0x9000, scoped, tag = 'internal scratch']
  #allocation2 [shape = 'bf16[16,384]{1,0:T(8,128)(2,1)}', space=vmem, size = 0x3000, scoped, tag = 'scratch operand']
  %s0 = inlined_call_operand.hbm [shape: bf16[16,16], index: 0, kind: input, shape index: {}]
  %s1 = inlined_call_operand.hbm [shape: bf16[16,128], index: 1, kind: input, shape index: {}]
  %s2 = inlined_call_operand.vmem [shape: bf16[2,16], index: 2, kind: input, shape index: {}]
  %s3 = inlined_call_operand.hbm [shape: bf16[128,128], index: 3, kind: input, shape index: {}]
  %s4 = inlined_call_operand.vmem [shape: f32[1,128], index: 4, kind: input, shape index: {}]
  %s5 = inlined_call_operand.hbm [shape: bf16[128,128], index: 5, kind: input, shape index: {}]
  %s6 = inlined_call_operand.vmem [shape: f32[1,128], index: 6, kind: input, shape index: {}]
  %s7 = inlined_call_operand.vmem [shape: f32[1,128], index: 7, kind: input, shape index: {}]
  %s8 = inlined_call_operand.vmem [shape: f32[1,128], index: 8, kind: input, shape index: {}]
  %s9 = inlined_call_operand.hbm [shape: bf16[128,128], index: 9, kind: input, shape index: {}]
  %s10 = inlined_call_operand.vmem [shape: f32[1,128], index: 10, kind: input, shape index: {}]
  %s11 = inlined_call_operand.hbm [shape: bf16[128,128], index: 11, kind: input, shape index: {}]
  %s12 = inlined_call_operand.vmem [shape: f32[1,128], index: 12, kind: input, shape index: {}]
  %s13 = inlined_call_operand.vmem [shape: f32[1,128], index: 13, kind: input, shape index: {}]
  %s14 = inlined_call_operand.vmem [shape: f32[1,128], index: 14, kind: input, shape index: {}]
  %s15 = inlined_call_operand.hbm [shape: bf16[128,128], index: 15, kind: input, shape index: {}]
  %s16 = inlined_call_operand.vmem [shape: f32[1,128], index: 16, kind: input, shape index: {}]
  %s17 = inlined_call_operand.hbm [shape: bf16[128,128], index: 17, kind: input, shape index: {}]
  %s18 = inlined_call_operand.vmem [shape: f32[1,128], index: 18, kind: input, shape index: {}]
  %s19 = inlined_call_operand.vmem [shape: f32[1,128], index: 19, kind: input, shape index: {}]
  %s20 = inlined_call_operand.vmem [shape: f32[1,128], index: 20, kind: input, shape index: {}]
  %s21 = inlined_call_operand.hbm [shape: f32[2,384], index: 21, kind: output, shape index: {}]
  %s22 = sld [smem:[#allocation0]]
  $region126: #{tpu_custom_call.1} parent=0
    _
  %s24 = ssub.s32 1, %s22
  %s25 = scalar_select 0, %s24, %s22
  $region1: #{tpu_custom_call.1} parent=0
    #allocation3 [shape = 'u8[4096]{0}', space=vmem, size = 0x1000, scoped, tag = 'input window, operand 0, single buffered']
    #allocation4 [shape = 's32[1]{0}', space=sflag, size = 0x4, scoped, tag = 'scoped memory for tpu_custom_call.1']
    #allocation5 [shape = 's32[1]{0}', space=sflag, size = 0x4, scoped, tag = 'scoped memory for tpu_custom_call.1']
    #allocation6 [shape = 'u8[4096]{0}', space=vmem, size = 0x1000, scoped, tag = 'input window, operand 1, single buffered']
    #allocation7 [shape = 's32[1]{0}', space=sflag, size = 0x4, scoped, tag = 'scoped memory for tpu_custom_call.1']
    #allocation8 [shape = 'u8[32768]{0}', space=vmem, size = 0x8000, scoped, tag = 'input window, operand 3, single buffered']
    #allocation9 [shape = 'u8[32768]{0}', space=vmem, size = 0x8000, scoped, tag = 'input window, operand 5, single buffered']
    #allocation10 [shape = 's32[1]{0}', space=sflag, size = 0x4, scoped, tag = 'scoped memory for tpu_custom_call.1']
    #allocation11 [shape = 'u8[32768]{0}', space=vmem, size = 0x8000, scoped, tag = 'input window, operand 9, single buffered']
    #allocation12 [shape = 'u8[32768]{0}', space=vmem, size = 0x8000, scoped, tag = 'input window, operand 11, single buffered']
    #allocation13 [shape = 's32[1]{0}', space=sflag, size = 0x4, scoped, tag = 'scoped memory for tpu_custom_call.1']
    #allocation14 [shape = 'u8[32768]{0}', space=vmem, size = 0x8000, scoped, tag = 'input window, operand 15, single buffered']
    #allocation15 [shape = 'u8[32768]{0}', space=vmem, size = 0x8000, scoped, tag = 'input window, operand 17, single buffered']
    #allocation16 [shape = 's32[1]{0}', space=sflag, size = 0x4, scoped, tag = 'scoped memory for tpu_custom_call.1']
    #allocation17 [shape = 'u8[3072]{0}', space=vmem, size = 0xc00, scoped, tag = 'output window, operand 0, single buffered']
    %26 = vsyncpa [#allocation4], 0
    %27 = vsyncpa [#allocation7], 0
    %28 = vsyncpa [#allocation10], 0
    %29 = vsyncpa [#allocation13], 0
    %30 = vsyncpa [#allocation16], 0
    %31 = vsyncpa [#allocation5], 0
    // Predicated region
    $region2: #{tpu_custom_call.1} parent=1 // pred_check
      _
    $region3: #{tpu_custom_call.1} parent=1 // pred_check_branch
      %33 = sbr.rel (0) target = $region5
    $region4: #{tpu_custom_call.1} parent=1 // pred_region
      %35 = vsyncadd [#allocation4], 0
      %s36 = sshll.u32 %s0, 4
      %s37 = int_to_ptr.hbm [resolvable:$true] %s36
      %s38 = sshll.u32 [#allocation3], 4
      %s39 = int_to_ptr.vmem [resolvable:$true] %s38
      %44 = dma.hbm_to_vmem [thread:$0]  %s37, 128, %s39, [#allocation4], 64, 64, 4
    $region5: #{tpu_custom_call.1} parent=1 // pred_fallthru
      _
    // Predicated region
    $region6: #{tpu_custom_call.1} parent=1 // pred_check
      _
    $region7: #{tpu_custom_call.1} parent=1 // pred_check_branch
      %46 = sbr.rel (0) target = $region9
    $region8: #{tpu_custom_call.1} parent=1 // pred_region
      %48 = vsyncadd [#allocation7], 0
      %s49 = sshll.u32 %s1, 4
      %s50 = int_to_ptr.hbm [resolvable:$true] %s49
      %s51 = sshll.u32 [#allocation6], 4
      %s52 = int_to_ptr.vmem [resolvable:$true] %s51
      %57 = dma.hbm_to_vmem [thread:$0]  %s50, 128, %s52, [#allocation7], 64, 64, 4
    $region9: #{tpu_custom_call.1} parent=1 // pred_fallthru
      _
    // Predicated region
    $region10: #{tpu_custom_call.1} parent=1 // pred_check
      _
    $region11: #{tpu_custom_call.1} parent=1 // pred_check_branch
      %59 = sbr.rel (0) target = $region13
    $region12: #{tpu_custom_call.1} parent=1 // pred_region
      _
    $region13: #{tpu_custom_call.1} parent=1 // pred_fallthru
      _
    // Predicated region
    $region14: #{tpu_custom_call.1} parent=1 // pred_check
      _
    $region15: #{tpu_custom_call.1} parent=1 // pred_check_branch
      %61 = sbr.rel (0) target = $region17
    $region16: #{tpu_custom_call.1} parent=1 // pred_region
      %63 = vsyncadd [#allocation7], 0
      %s64 = sshll.u32 %s3, 4
      %s65 = int_to_ptr.hbm [resolvable:$true] %s64
      %s66 = sshll.u32 [#allocation8], 4
      %s67 = int_to_ptr.vmem [resolvable:$true] %s66
      %72 = dma.hbm_to_vmem [thread:$0]  %s65, 1024, %s67, [#allocation7], 64, 64, 4
    $region17: #{tpu_custom_call.1} parent=1 // pred_fallthru
      _
    // Predicated region
    $region18: #{tpu_custom_call.1} parent=1 // pred_check
      _
    $region19: #{tpu_custom_call.1} parent=1 // pred_check_branch
      %74 = sbr.rel (0) target = $region21
    $region20: #{tpu_custom_call.1} parent=1 // pred_region
      _
    $region21: #{tpu_custom_call.1} parent=1 // pred_fallthru
      _
    // Predicated region
    $region22: #{tpu_custom_call.1} parent=1 // pred_check
      _
    $region23: #{tpu_custom_call.1} parent=1 // pred_check_branch
      %76 = sbr.rel (0) target = $region25
    $region24: #{tpu_custom_call.1} parent=1 // pred_region
      %78 = vsyncadd [#allocation10], 0
      %s79 = sshll.u32 %s5, 4
      %s80 = int_to_ptr.hbm [resolvable:$true] %s79
      %s81 = sshll.u32 [#allocation9], 4
      %s82 = int_to_ptr.vmem [resolvable:$true] %s81
      %87 = dma.hbm_to_vmem [thread:$0]  %s80, 1024, %s82, [#allocation10], 64, 64, 4
    $region25: #{tpu_custom_call.1} parent=1 // pred_fallthru
      _
    // Predicated region
    $region26: #{tpu_custom_call.1} parent=1 // pred_check
      _
    $region27: #{tpu_custom_call.1} parent=1 // pred_check_branch
      %89 = sbr.rel (0) target = $region29
    $region28: #{tpu_custom_call.1} parent=1 // pred_region
      _
    $region29: #{tpu_custom_call.1} parent=1 // pred_fallthru
      _
    // Predicated region
    $region30: #{tpu_custom_call.1} parent=1 // pred_check
      _
    $region31: #{tpu_custom_call.1} parent=1 // pred_check_branch
      %91 = sbr.rel (0) target = $region33
    $region32: #{tpu_custom_call.1} parent=1 // pred_region
      _
    $region33: #{tpu_custom_call.1} parent=1 // pred_fallthru
      _
    // Predicated region
    $region34: #{tpu_custom_call.1} parent=1 // pred_check
      _
    $region35: #{tpu_custom_call.1} parent=1 // pred_check_branch
      %93 = sbr.rel (0) target = $region37
    $region36: #{tpu_custom_call.1} parent=1 // pred_region
      _
    $region37: #{tpu_custom_call.1} parent=1 // pred_fallthru
      _
    // Predicated region
    $region38: #{tpu_custom_call.1} parent=1 // pred_check
      _
    $region39: #{tpu_custom_call.1} parent=1 // pred_check_branch
      %95 = sbr.rel (0) target = $region41
    $region40: #{tpu_custom_call.1} parent=1 // pred_region
      %97 = vsyncadd [#allocation10], 0
      %s98 = sshll.u32 %s9, 4
      %s99 = int_to_ptr.hbm [resolvable:$true] %s98
      %s100 = sshll.u32 [#allocation11], 4
      %s101 = int_to_ptr.vmem [resolvable:$true] %s100
      %106 = dma.hbm_to_vmem [thread:$0]  %s99, 1024, %s101, [#allocation10], 64, 64, 4
    $region41: #{tpu_custom_call.1} parent=1 // pred_fallthru
      _
    // Predicated region
    $region42: #{tpu_custom_call.1} parent=1 // pred_check
      _
    $region43: #{tpu_custom_call.1} parent=1 // pred_check_branch
      %108 = sbr.rel (0) target = $region45
    $region44: #{tpu_custom_call.1} parent=1 // pred_region
      _
    $region45: #{tpu_custom_call.1} parent=1 // pred_fallthru
      _
    // Predicated region
    $region46: #{tpu_custom_call.1} parent=1 // pred_check
      _
    $region47: #{tpu_custom_call.1} parent=1 // pred_check_branch
      %110 = sbr.rel (0) target = $region49
    $region48: #{tpu_custom_call.1} parent=1 // pred_region
      %112 = vsyncadd [#allocation13], 0
      %s113 = sshll.u32 %s11, 4
      %s114 = int_to_ptr.hbm [resolvable:$true] %s113
      %s115 = sshll.u32 [#allocation12], 4
      %s116 = int_to_ptr.vmem [resolvable:$true] %s115
      %121 = dma.hbm_to_vmem [thread:$0]  %s114, 1024, %s116, [#allocation13], 64, 64, 4
    $region49: #{tpu_custom_call.1} parent=1 // pred_fallthru
      _
    // Predicated region
    $region50: #{tpu_custom_call.1} parent=1 // pred_check
      _
    $region51: #{tpu_custom_call.1} parent=1 // pred_check_branch
      %123 = sbr.rel (0) target = $region53
    $region52: #{tpu_custom_call.1} parent=1 // pred_region
      _
    $region53: #{tpu_custom_call.1} parent=1 // pred_fallthru
      _
    // Predicated region
    $region54: #{tpu_custom_call.1} parent=1 // pred_check
      _
    $region55: #{tpu_custom_call.1} parent=1 // pred_check_branch
      %125 = sbr.rel (0) target = $region57
    $region56: #{tpu_custom_call.1} parent=1 // pred_region
      _
    $region57: #{tpu_custom_call.1} parent=1 // pred_fallthru
      _
    // Predicated region
    $region58: #{tpu_custom_call.1} parent=1 // pred_check
      _
    $region59: #{tpu_custom_call.1} parent=1 // pred_check_branch
      %127 = sbr.rel (0) target = $region61
    $region60: #{tpu_custom_call.1} parent=1 // pred_region
      _
    $region61: #{tpu_custom_call.1} parent=1 // pred_fallthru
      _
    // Predicated region
    $region62: #{tpu_custom_call.1} parent=1 // pred_check
      _
    $region63: #{tpu_custom_call.1} parent=1 // pred_check_branch
      %129 = sbr.rel (0) target = $region65
    $region64: #{tpu_custom_call.1} parent=1 // pred_region
      %131 = vsyncadd [#allocation13], 0
      %s132 = sshll.u32 %s15, 4
      %s133 = int_to_ptr.hbm [resolvable:$true] %s132
      %s134 = sshll.u32 [#allocation14], 4
      %s135 = int_to_ptr.vmem [resolvable:$true] %s134
      %140 = dma.hbm_to_vmem [thread:$0]  %s133, 1024, %s135, [#allocation13], 64, 64, 4
    $region65: #{tpu_custom_call.1} parent=1 // pred_fallthru
      _
    // Predicated region
    $region66: #{tpu_custom_call.1} parent=1 // pred_check
      _
    $region67: #{tpu_custom_call.1} parent=1 // pred_check_branch
      %142 = sbr.rel (0) target = $region69
    $region68: #{tpu_custom_call.1} parent=1 // pred_region
      _
    $region69: #{tpu_custom_call.1} parent=1 // pred_fallthru
      _
    // Predicated region
    $region70: #{tpu_custom_call.1} parent=1 // pred_check
      _
    $region71: #{tpu_custom_call.1} parent=1 // pred_check_branch
      %144 = sbr.rel (0) target = $region73
    $region72: #{tpu_custom_call.1} parent=1 // pred_region
      %146 = vsyncadd [#allocation16], 0
      %s147 = sshll.u32 %s17, 4
      %s148 = int_to_ptr.hbm [resolvable:$true] %s147
      %s149 = sshll.u32 [#allocation15], 4
      %s150 = int_to_ptr.vmem [resolvable:$true] %s149
      %155 = dma.hbm_to_vmem [thread:$0]  %s148, 1024, %s150, [#allocation16], 64, 64, 4
    $region73: #{tpu_custom_call.1} parent=1 // pred_fallthru
      _
    // Predicated region
    $region74: #{tpu_custom_call.1} parent=1 // pred_check
      _
    $region75: #{tpu_custom_call.1} parent=1 // pred_check_branch
      %157 = sbr.rel (0) target = $region77
    $region76: #{tpu_custom_call.1} parent=1 // pred_region
      _
    $region77: #{tpu_custom_call.1} parent=1 // pred_fallthru
      _
    // Predicated region
    $region78: #{tpu_custom_call.1} parent=1 // pred_check
      _
    $region79: #{tpu_custom_call.1} parent=1 // pred_check_branch
      %159 = sbr.rel (0) target = $region81
    $region80: #{tpu_custom_call.1} parent=1 // pred_region
      _
    $region81: #{tpu_custom_call.1} parent=1 // pred_fallthru
      _
    // Predicated region
    $region82: #{tpu_custom_call.1} parent=1 // pred_check
      _
    $region83: #{tpu_custom_call.1} parent=1 // pred_check_branch
      %161 = sbr.rel (0) target = $region85
    $region84: #{tpu_custom_call.1} parent=1 // pred_region
      _
    $region85: #{tpu_custom_call.1} parent=1 // pred_fallthru
      _
    // Predicated region
    $region86: #{tpu_custom_call.1} parent=1 // pred_check
      _
    $region87: #{tpu_custom_call.1} parent=1 // pred_check_branch
      %163 = sbr.rel (0) target = $region89
    $region88: #{tpu_custom_call.1} parent=1 // pred_region
      %165 = dma.done [#allocation4], 128
    $region89: #{tpu_custom_call.1} parent=1 // pred_fallthru
      _
    // Predicated region
    $region90: #{tpu_custom_call.1} parent=1 // pred_check
      _
    $region91: #{tpu_custom_call.1} parent=1 // pred_check_branch
      %167 = sbr.rel (0) target = $region93
    $region92: #{tpu_custom_call.1} parent=1 // pred_region
      %169 = dma.done [#allocation7], 128
    $region93: #{tpu_custom_call.1} parent=1 // pred_fallthru
      _
    // Predicated region
    $region94: #{tpu_custom_call.1} parent=1 // pred_check
      _
    $region95: #{tpu_custom_call.1} parent=1 // pred_check_branch
      %171 = sbr.rel (0) target = $region97
    $region96: #{tpu_custom_call.1} parent=1 // pred_region
      %173 = dma.done [#allocation7], 1024
    $region97: #{tpu_custom_call.1} parent=1 // pred_fallthru
      _
    // Predicated region
    $region98: #{tpu_custom_call.1} parent=1 // pred_check
      _
    $region99: #{tpu_custom_call.1} parent=1 // pred_check_branch
      %175 = sbr.rel (0) target = $region101
    $region100: #{tpu_custom_call.1} parent=1 // pred_region
      %177 = dma.done [#allocation10], 1024
    $region101: #{tpu_custom_call.1} parent=1 // pred_fallthru
      _
    // Predicated region
    $region102: #{tpu_custom_call.1} parent=1 // pred_check
      _
    $region103: #{tpu_custom_call.1} parent=1 // pred_check_branch
      %179 = sbr.rel (0) target = $region105
    $region104: #{tpu_custom_call.1} parent=1 // pred_region
      %181 = dma.done [#allocation10], 1024
    $region105: #{tpu_custom_call.1} parent=1 // pred_fallthru
      _
    // Predicated region
    $region106: #{tpu_custom_call.1} parent=1 // pred_check
      _
    $region107: #{tpu_custom_call.1} parent=1 // pred_check_branch
      %183 = sbr.rel (0) target = $region109
    $region108: #{tpu_custom_call.1} parent=1 // pred_region
      %185 = dma.done [#allocation13], 1024
    $region109: #{tpu_custom_call.1} parent=1 // pred_fallthru
      _
    // Predicated region
    $region110: #{tpu_custom_call.1} parent=1 // pred_check
      _
    $region111: #{tpu_custom_call.1} parent=1 // pred_check_branch
      %187 = sbr.rel (0) target = $region113
    $region112: #{tpu_custom_call.1} parent=1 // pred_region
      %189 = dma.done [#allocation13], 1024
    $region113: #{tpu_custom_call.1} parent=1 // pred_fallthru
      _
    // Predicated region
    $region114: #{tpu_custom_call.1} parent=1 // pred_check
      _
    $region115: #{tpu_custom_call.1} parent=1 // pred_check_branch
      %191 = sbr.rel (0) target = $region117
    $region116: #{tpu_custom_call.1} parent=1 // pred_region
      %193 = dma.done [#allocation16], 1024
    $region117: #{tpu_custom_call.1} parent=1 // pred_fallthru
      _
    %v195 = vlaneseq
    %v196 = vshrl.u32 %v195, 7
    %v197 = vadd.s32 %v196, 8
    %vm198 = vcmp.lt.s32.totalorder %v196, 16
    %vm199 = vcmp.lt.s32.totalorder %v197, 16
    %v200 = vsel %vm198, 1, 0
    %v201 = vsel %vm199, 1, 0
    %v202 = vcvt.s32.f32 %v200
    %v203 = vcvt.s32.f32 %v201
    %v204 = vld [vmem:[#allocation3] sm:$0xf]
    %v205 = vld [vmem:[#allocation3 + $0x4] sm:$0xf]
    %v206 = vld [vmem:[#allocation6] sm:$0xf]
    %v207 = vld [vmem:[#allocation6 + $0x4] sm:$0xf]
    %v208 = vld [vmem:[#allocation8] sm:$0xf]
    %v209 = vld [vmem:[#allocation8 + $0x4] sm:$0xf]
    %v210 = vld [vmem:[#allocation8 + $0x8] sm:$0xf]
    %v211 = vld [vmem:[#allocation8 + $0xc] sm:$0xf]
    %v212 = vld [vmem:[#allocation8 + $0x10] sm:$0xf]
    %v213 = vld [vmem:[#allocation8 + $0x14] sm:$0xf]
    %v214 = vld [vmem:[#allocation8 + $0x18] sm:$0xf]
    %v215 = vld [vmem:[#allocation8 + $0x1c] sm:$0xf]
    %v216 = vld [vmem:[#allocation8 + $0x20] sm:$0xf]
    %v217 = vld [vmem:[#allocation8 + $0x24] sm:$0xf]
    %v218 = vld [vmem:[#allocation8 + $0x28] sm:$0xf]
    %v219 = vld [vmem:[#allocation8 + $0x2c] sm:$0xf]
    %v220 = vld [vmem:[#allocation8 + $0x30] sm:$0xf]
    %v221 = vld [vmem:[#allocation8 + $0x34] sm:$0xf]
    %v222 = vld [vmem:[#allocation8 + $0x38] sm:$0xf]
    %v223 = vld [vmem:[#allocation8 + $0x3c] sm:$0xf]
    %v224 = vld [vmem:[#allocation9] sm:$0xf]
    %v225 = vld [vmem:[#allocation9 + $0x4] sm:$0xf]
    %v226 = vld [vmem:[#allocation9 + $0x8] sm:$0xf]
    %v227 = vld [vmem:[#allocation9 + $0xc] sm:$0xf]
    %v228 = vld [vmem:[#allocation9 + $0x10] sm:$0xf]
    %v229 = vld [vmem:[#allocation9 + $0x14] sm:$0xf]
    %v230 = vld [vmem:[#allocation9 + $0x18] sm:$0xf]
    %v231 = vld [vmem:[#allocation9 + $0x1c] sm:$0xf]
    %v232 = vld [vmem:[#allocation9 + $0x20] sm:$0xf]
    %v233 = vld [vmem:[#allocation9 + $0x24] sm:$0xf]
    %v234 = vld [vmem:[#allocation9 + $0x28] sm:$0xf]
    %v235 = vld [vmem:[#allocation9 + $0x2c] sm:$0xf]
    %v236 = vld [vmem:[#allocation9 + $0x30] sm:$0xf]
    %v237 = vld [vmem:[#allocation9 + $0x34] sm:$0xf]
    %v238 = vld [vmem:[#allocation9 + $0x38] sm:$0xf]
    %v239 = vld [vmem:[#allocation9 + $0x3c] sm:$0xf]
    %v240 = vld [vmem:[%s4] sm:$0x1]
    %v241 = vld [vmem:[%s6] sm:$0x1]
    %v244 = vunpack.c.l.b16 %v204
    %v245 = vunpack.c.l.b16 %v205
    %v246 = vpack.c.b16 %v245, %v244
    %v249 = vunpack.c.l.b16 %v206
    %v250 = vunpack.c.l.b16 %v207
    %v251 = vpack.c.b16 %v250, %v249
    %vm253 = vcmask 130048
    %v255 = vsel %vm253, %v246, 0
    %257 = vmatpush.bf16.msra.mxu0 0
    %258 = vmatpush.bf16.msra.mxu0 0
    %259 = vmatpush.bf16.msra.mxu0 0
    %260 = vmatpush.bf16.msra.mxu0 0
    %261 = vmatpush.bf16.msra.mxu0 0
    %262 = vmatpush.bf16.msra.mxu0 0
    %263 = vmatpush.bf16.msra.mxu0 0
    %264 = vmatpush.bf16.msra.mxu0 %v251
    %265 = vmatmul.bf16.gmra.mxu0 %v255
    %v266 = vpop.f32.mrf.mxu0
    %v267 = vadd.f32 0.0, %v266
    %v268 = vpop.f32.mrf.mxu0
    %v269 = vadd.f32 0.0, %v268
    %270 = vdwg.mxu0
    %v271 = vpack.c.bf16 %v269, %v267
    %v273 = vperm.slane %v240, 0
    %v291 = vunpack.c.l.b16 %v208
    %v292 = vunpack.c.l.b16 %v209
    %v293 = vunpack.c.l.b16 %v210
    %v294 = vunpack.c.l.b16 %v211
    %v295 = vunpack.c.l.b16 %v212
    %v296 = vunpack.c.l.b16 %v213
    %v297 = vunpack.c.l.b16 %v214
    %v298 = vunpack.c.l.b16 %v215
    %v299 = vunpack.c.l.b16 %v216
    %v300 = vunpack.c.l.b16 %v217
    %v301 = vunpack.c.l.b16 %v218
    %v302 = vunpack.c.l.b16 %v219
    %v303 = vunpack.c.l.b16 %v220
    %v304 = vunpack.c.l.b16 %v221
    %v305 = vunpack.c.l.b16 %v222
    %v306 = vunpack.c.l.b16 %v223
    %v307 = vpack.c.b16 %v292, %v291
    %v308 = vpack.c.b16 %v294, %v293
    %v309 = vpack.c.b16 %v296, %v295
    %v310 = vpack.c.b16 %v298, %v297
    %v311 = vpack.c.b16 %v300, %v299
    %v312 = vpack.c.b16 %v302, %v301
    %v313 = vpack.c.b16 %v304, %v303
    %v314 = vpack.c.b16 %v306, %v305
    %323 = vmatpush.bf16.msra.mxu0 %v314
    %324 = vmatpush.bf16.msra.mxu0 %v313
    %325 = vmatpush.bf16.msra.mxu0 %v312
    %326 = vmatpush.bf16.msra.mxu0 %v311
    %327 = vmatpush.bf16.msra.mxu0 %v310
    %328 = vmatpush.bf16.msra.mxu0 %v309
    %329 = vmatpush.bf16.msra.mxu0 %v308
    %330 = vmatpush.bf16.msra.mxu0 %v307
    %331 = vmatmul.bf16.gmra.mxu0 %v271
    %v332 = vpop.f32.mrf.mxu0
    %v333 = vadd.f32 %v273, %v332
    %v334 = vpop.f32.mrf.mxu0
    %v335 = vadd.f32 %v273, %v334
    %336 = vdwg.mxu0
    %v337 = vmax.f32 %v333, 0.0
    %v338 = vmax.f32 %v335, 0.0
    %v339 = vpack.c.bf16 %v338, %v337
    %v341 = vperm.slane %v241, 0
    %v359 = vunpack.c.l.b16 %v224
    %v360 = vunpack.c.l.b16 %v225
    %v361 = vunpack.c.l.b16 %v226
    %v362 = vunpack.c.l.b16 %v227
    %v363 = vunpack.c.l.b16 %v228
    %v364 = vunpack.c.l.b16 %v229
    %v365 = vunpack.c.l.b16 %v230
    %v366 = vunpack.c.l.b16 %v231
    %v367 = vunpack.c.l.b16 %v232
    %v368 = vunpack.c.l.b16 %v233
    %v369 = vunpack.c.l.b16 %v234
    %v370 = vunpack.c.l.b16 %v235
    %v371 = vunpack.c.l.b16 %v236
    %v372 = vunpack.c.l.b16 %v237
    %v373 = vunpack.c.l.b16 %v238
    %v374 = vunpack.c.l.b16 %v239
    %v375 = vpack.c.b16 %v360, %v359
    %v376 = vpack.c.b16 %v362, %v361
    %v377 = vpack.c.b16 %v364, %v363
    %v378 = vpack.c.b16 %v366, %v365
    %v379 = vpack.c.b16 %v368, %v367
    %v380 = vpack.c.b16 %v370, %v369
    %v381 = vpack.c.b16 %v372, %v371
    %v382 = vpack.c.b16 %v374, %v373
    %391 = vmatpush.bf16.msra.mxu0 %v382
    %392 = vmatpush.bf16.msra.mxu0 %v381
    %393 = vmatpush.bf16.msra.mxu0 %v380
    %394 = vmatpush.bf16.msra.mxu0 %v379
    %395 = vmatpush.bf16.msra.mxu0 %v378
    %396 = vmatpush.bf16.msra.mxu0 %v377
    %397 = vmatpush.bf16.msra.mxu0 %v376
    %398 = vmatpush.bf16.msra.mxu0 %v375
    %399 = vmatmul.bf16.gmra.mxu0 %v339
    %v400 = vpop.f32.mrf.mxu0
    %v401 = vadd.f32 %v341, %v400
    %v402 = vpop.f32.mrf.mxu0
    %v403 = vadd.f32 %v341, %v402
    %404 = vdwg.mxu0
    %v405 = vmax.f32 %v401, 0.0
    %v406 = vmax.f32 %v403, 0.0
    %v407 = vmul.f32 %v405, %v202
    %v408 = vmul.f32 %v406, %v203
    %v409 = vadd.f32 %v407, %v408
    %v410 = vrot.slane %v409, 4
    %v411 = vadd.f32 %v409, %v410
    %v412 = vrot.slane %v411, 2
    %v413 = vadd.f32 %v411, %v412
    %v414 = vrot.slane %v413, 1
    %v415 = vadd.f32 %v413, %v414
    %v416 = vmul.f32 %v415, 0.0625
    %v417 = vsub.f32 %v405, %v416
    %v418 = vsub.f32 %v406, %v416
    %v419 = vmul.f32 %v417, %v417
    %v420 = vmul.f32 %v418, %v418
    %v421 = vmul.f32 %v419, %v202
    %v422 = vmul.f32 %v420, %v203
    %v423 = vadd.f32 %v421, %v422
    %v424 = vrot.slane %v423, 4
    %v425 = vadd.f32 %v423, %v424
    %v426 = vrot.slane %v425, 2
    %v427 = vadd.f32 %v425, %v426
    %v428 = vrot.slane %v427, 1
    %v429 = vadd.f32 %v427, %v428
    %v430 = vmul.f32 %v429, 0.0625
    %v431 = vadd.f32 %v430, 1e-05
    %v432 = vrsqrt.pop %v431
    %v433 = vmul.f32 %v432, %v431
    %v434 = vmul.f32 %v433, %v432
    %v435 = vmul.f32 0.5, %v434
    %v436 = vsub.f32 1.5, %v435
    %v437 = vmul.f32 %v432, %v436
    %vm438 = vweird.f32 %v431
    %vm439 = vweird.f32 %v432
    %vm440 = vmor %vm438, %vm439
    %v441 = vsel %vm440, %v432, %v437
    %v442 = vmul.f32 %v417, %v441
    %v443 = vmul.f32 %v418, %v441
    %v444 = vld [vmem:[%s7] sm:$0x1]
    %v446 = vperm.slane %v444, 0
    %v448 = vmul.f32 %v442, %v446
    %v449 = vmul.f32 %v443, %v446
    %v450 = vld [vmem:[%s8] sm:$0x1]
    %v452 = vperm.slane %v450, 0
    %v454 = vadd.f32 %v448, %v452
    %v455 = vadd.f32 %v449, %v452
    %v456 = vmul.f32 %v454, %v202
    %v457 = vmul.f32 %v455, %v203
    %v458 = vpack.c.bf16 %v456, %v456
    %v459 = vpack.c.bf16 %v457, %v457
    %460 = vst [vmem:[#allocation2] sm:$0xf] %v458
    %461 = vst [vmem:[#allocation2 + $0xc] sm:$0xf] %v459
    %v462 = vld [vmem:[#allocation11] sm:$0xf]
    %v463 = vld [vmem:[#allocation11 + $0x4] sm:$0xf]
    %v464 = vld [vmem:[#allocation11 + $0x8] sm:$0xf]
    %v465 = vld [vmem:[#allocation11 + $0xc] sm:$0xf]
    %v466 = vld [vmem:[#allocation11 + $0x10] sm:$0xf]
    %v467 = vld [vmem:[#allocation11 + $0x14] sm:$0xf]
    %v468 = vld [vmem:[#allocation11 + $0x18] sm:$0xf]
    %v469 = vld [vmem:[#allocation11 + $0x1c] sm:$0xf]
    %v470 = vld [vmem:[#allocation11 + $0x20] sm:$0xf]
    %v471 = vld [vmem:[#allocation11 + $0x24] sm:$0xf]
    %v472 = vld [vmem:[#allocation11 + $0x28] sm:$0xf]
    %v473 = vld [vmem:[#allocation11 + $0x2c] sm:$0xf]
    %v474 = vld [vmem:[#allocation11 + $0x30] sm:$0xf]
    %v475 = vld [vmem:[#allocation11 + $0x34] sm:$0xf]
    %v476 = vld [vmem:[#allocation11 + $0x38] sm:$0xf]
    %v477 = vld [vmem:[#allocation11 + $0x3c] sm:$0xf]
    %v478 = vld [vmem:[#allocation12] sm:$0xf]
    %v479 = vld [vmem:[#allocation12 + $0x4] sm:$0xf]
    %v480 = vld [vmem:[#allocation12 + $0x8] sm:$0xf]
    %v481 = vld [vmem:[#allocation12 + $0xc] sm:$0xf]
    %v482 = vld [vmem:[#allocation12 + $0x10] sm:$0xf]
    %v483 = vld [vmem:[#allocation12 + $0x14] sm:$0xf]
    %v484 = vld [vmem:[#allocation12 + $0x18] sm:$0xf]
    %v485 = vld [vmem:[#allocation12 + $0x1c] sm:$0xf]
    %v486 = vld [vmem:[#allocation12 + $0x20] sm:$0xf]
    %v487 = vld [vmem:[#allocation12 + $0x24] sm:$0xf]
    %v488 = vld [vmem:[#allocation12 + $0x28] sm:$0xf]
    %v489 = vld [vmem:[#allocation12 + $0x2c] sm:$0xf]
    %v490 = vld [vmem:[#allocation12 + $0x30] sm:$0xf]
    %v491 = vld [vmem:[#allocation12 + $0x34] sm:$0xf]
    %v492 = vld [vmem:[#allocation12 + $0x38] sm:$0xf]
    %v493 = vld [vmem:[#allocation12 + $0x3c] sm:$0xf]
    %v494 = vld [vmem:[%s10] sm:$0x1]
    %v495 = vld [vmem:[%s12] sm:$0x1]
    %v498 = vunpack.c.l.b16 %v458
    %v499 = vunpack.c.l.b16 %v459
    %v500 = vpack.c.b16 %v499, %v498
    %502 = vmatpush.bf16.msra.mxu0 0
    %503 = vmatpush.bf16.msra.mxu0 0
    %504 = vmatpush.bf16.msra.mxu0 0
    %505 = vmatpush.bf16.msra.mxu0 0
    %506 = vmatpush.bf16.msra.mxu0 0
    %507 = vmatpush.bf16.msra.mxu0 0
    %508 = vmatpush.bf16.msra.mxu0 0
    %509 = vmatpush.bf16.msra.mxu0 %v500
    %510 = vmatmul.bf16.gmra.mxu0 %v255
    %v511 = vpop.f32.mrf.mxu0
    %v512 = vadd.f32 0.0, %v511
    %v513 = vpop.f32.mrf.mxu0
    %v514 = vadd.f32 0.0, %v513
    %515 = vdwg.mxu0
    %v516 = vpack.c.bf16 %v514, %v512
    %v518 = vperm.slane %v494, 0
    %v536 = vunpack.c.l.b16 %v462
    %v537 = vunpack.c.l.b16 %v463
    %v538 = vunpack.c.l.b16 %v464
    %v539 = vunpack.c.l.b16 %v465
    %v540 = vunpack.c.l.b16 %v466
    %v541 = vunpack.c.l.b16 %v467
    %v542 = vunpack.c.l.b16 %v468
    %v543 = vunpack.c.l.b16 %v469
    %v544 = vunpack.c.l.b16 %v470
    %v545 = vunpack.c.l.b16 %v471
    %v546 = vunpack.c.l.b16 %v472
    %v547 = vunpack.c.l.b16 %v473
    %v548 = vunpack.c.l.b16 %v474
    %v549 = vunpack.c.l.b16 %v475
    %v550 = vunpack.c.l.b16 %v476
    %v551 = vunpack.c.l.b16 %v477
    %v552 = vpack.c.b16 %v537, %v536
    %v553 = vpack.c.b16 %v539, %v538
    %v554 = vpack.c.b16 %v541, %v540
    %v555 = vpack.c.b16 %v543, %v542
    %v556 = vpack.c.b16 %v545, %v544
    %v557 = vpack.c.b16 %v547, %v546
    %v558 = vpack.c.b16 %v549, %v548
    %v559 = vpack.c.b16 %v551, %v550
    %568 = vmatpush.bf16.msra.mxu0 %v559
    %569 = vmatpush.bf16.msra.mxu0 %v558
    %570 = vmatpush.bf16.msra.mxu0 %v557
    %571 = vmatpush.bf16.msra.mxu0 %v556
    %572 = vmatpush.bf16.msra.mxu0 %v555
    %573 = vmatpush.bf16.msra.mxu0 %v554
    %574 = vmatpush.bf16.msra.mxu0 %v553
    %575 = vmatpush.bf16.msra.mxu0 %v552
    %576 = vmatmul.bf16.gmra.mxu0 %v516
    %v577 = vpop.f32.mrf.mxu0
    %v578 = vadd.f32 %v518, %v577
    %v579 = vpop.f32.mrf.mxu0
    %v580 = vadd.f32 %v518, %v579
    %581 = vdwg.mxu0
    %v582 = vmax.f32 %v578, 0.0
    %v583 = vmax.f32 %v580, 0.0
    %v584 = vpack.c.bf16 %v583, %v582
    %v586 = vperm.slane %v495, 0
    %v604 = vunpack.c.l.b16 %v478
    %v605 = vunpack.c.l.b16 %v479
    %v606 = vunpack.c.l.b16 %v480
    %v607 = vunpack.c.l.b16 %v481
    %v608 = vunpack.c.l.b16 %v482
    %v609 = vunpack.c.l.b16 %v483
    %v610 = vunpack.c.l.b16 %v484
    %v611 = vunpack.c.l.b16 %v485
    %v612 = vunpack.c.l.b16 %v486
    %v613 = vunpack.c.l.b16 %v487
    %v614 = vunpack.c.l.b16 %v488
    %v615 = vunpack.c.l.b16 %v489
    %v616 = vunpack.c.l.b16 %v490
    %v617 = vunpack.c.l.b16 %v491
    %v618 = vunpack.c.l.b16 %v492
    %v619 = vunpack.c.l.b16 %v493
    %v620 = vpack.c.b16 %v605, %v604
    %v621 = vpack.c.b16 %v607, %v606
    %v622 = vpack.c.b16 %v609, %v608
    %v623 = vpack.c.b16 %v611, %v610
    %v624 = vpack.c.b16 %v613, %v612
    %v625 = vpack.c.b16 %v615, %v614
    %v626 = vpack.c.b16 %v617, %v616
    %v627 = vpack.c.b16 %v619, %v618
    %636 = vmatpush.bf16.msra.mxu0 %v627
    %637 = vmatpush.bf16.msra.mxu0 %v626
    %638 = vmatpush.bf16.msra.mxu0 %v625
    %639 = vmatpush.bf16.msra.mxu0 %v624
    %640 = vmatpush.bf16.msra.mxu0 %v623
    %641 = vmatpush.bf16.msra.mxu0 %v622
    %642 = vmatpush.bf16.msra.mxu0 %v621
    %643 = vmatpush.bf16.msra.mxu0 %v620
    %644 = vmatmul.bf16.gmra.mxu0 %v584
    %v645 = vpop.f32.mrf.mxu0
    %v646 = vadd.f32 %v586, %v645
    %v647 = vpop.f32.mrf.mxu0
    %v648 = vadd.f32 %v586, %v647
    %649 = vdwg.mxu0
    %v650 = vmax.f32 %v646, 0.0
    %v651 = vmax.f32 %v648, 0.0
    %v652 = vmul.f32 %v650, %v202
    %v653 = vmul.f32 %v651, %v203
    %v654 = vadd.f32 %v652, %v653
    %v655 = vrot.slane %v654, 4
    %v656 = vadd.f32 %v654, %v655
    %v657 = vrot.slane %v656, 2
    %v658 = vadd.f32 %v656, %v657
    %v659 = vrot.slane %v658, 1
    %v660 = vadd.f32 %v658, %v659
    %v661 = vmul.f32 %v660, 0.0625
    %v662 = vsub.f32 %v650, %v661
    %v663 = vsub.f32 %v651, %v661
    %v664 = vmul.f32 %v662, %v662
    %v665 = vmul.f32 %v663, %v663
    %v666 = vmul.f32 %v664, %v202
    %v667 = vmul.f32 %v665, %v203
    %v668 = vadd.f32 %v666, %v667
    %v669 = vrot.slane %v668, 4
    %v670 = vadd.f32 %v668, %v669
    %v671 = vrot.slane %v670, 2
    %v672 = vadd.f32 %v670, %v671
    %v673 = vrot.slane %v672, 1
    %v674 = vadd.f32 %v672, %v673
    %v675 = vmul.f32 %v674, 0.0625
    %v676 = vadd.f32 %v675, 1e-05
    %v677 = vrsqrt.pop %v676
    %v678 = vmul.f32 %v677, %v676
    %v679 = vmul.f32 %v678, %v677
    %v680 = vmul.f32 0.5, %v679
    %v681 = vsub.f32 1.5, %v680
    %v682 = vmul.f32 %v677, %v681
    %vm683 = vweird.f32 %v676
    %vm684 = vweird.f32 %v677
    %vm685 = vmor %vm683, %vm684
    %v686 = vsel %vm685, %v677, %v682
    %v687 = vmul.f32 %v662, %v686
    %v688 = vmul.f32 %v663, %v686
    %v689 = vld [vmem:[%s13] sm:$0x1]
    %v691 = vperm.slane %v689, 0
    %v693 = vmul.f32 %v687, %v691
    %v694 = vmul.f32 %v688, %v691
    %v695 = vld [vmem:[%s14] sm:$0x1]
    %v697 = vperm.slane %v695, 0
    %v699 = vadd.f32 %v693, %v697
    %v700 = vadd.f32 %v694, %v697
    %v701 = vmul.f32 %v699, %v202
    %v702 = vmul.f32 %v700, %v203
    %v703 = vpack.c.bf16 %v701, %v701
    %v704 = vpack.c.bf16 %v702, %v702
    %705 = vst [vmem:[#allocation2 + $0x4] sm:$0xf] %v703
    %706 = vst [vmem:[#allocation2 + $0x10] sm:$0xf] %v704
    %v707 = vld [vmem:[#allocation14] sm:$0xf]
    %v708 = vld [vmem:[#allocation14 + $0x4] sm:$0xf]
    %v709 = vld [vmem:[#allocation14 + $0x8] sm:$0xf]
    %v710 = vld [vmem:[#allocation14 + $0xc] sm:$0xf]
    %v711 = vld [vmem:[#allocation14 + $0x10] sm:$0xf]
    %v712 = vld [vmem:[#allocation14 + $0x14] sm:$0xf]
    %v713 = vld [vmem:[#allocation14 + $0x18] sm:$0xf]
    %v714 = vld [vmem:[#allocation14 + $0x1c] sm:$0xf]
    %v715 = vld [vmem:[#allocation14 + $0x20] sm:$0xf]
    %v716 = vld [vmem:[#allocation14 + $0x24] sm:$0xf]
    %v717 = vld [vmem:[#allocation14 + $0x28] sm:$0xf]
    %v718 = vld [vmem:[#allocation14 + $0x2c] sm:$0xf]
    %v719 = vld [vmem:[#allocation14 + $0x30] sm:$0xf]
    %v720 = vld [vmem:[#allocation14 + $0x34] sm:$0xf]
    %v721 = vld [vmem:[#allocation14 + $0x38] sm:$0xf]
    %v722 = vld [vmem:[#allocation14 + $0x3c] sm:$0xf]
    %v723 = vld [vmem:[#allocation15] sm:$0xf]
    %v724 = vld [vmem:[#allocation15 + $0x4] sm:$0xf]
    %v725 = vld [vmem:[#allocation15 + $0x8] sm:$0xf]
    %v726 = vld [vmem:[#allocation15 + $0xc] sm:$0xf]
    %v727 = vld [vmem:[#allocation15 + $0x10] sm:$0xf]
    %v728 = vld [vmem:[#allocation15 + $0x14] sm:$0xf]
    %v729 = vld [vmem:[#allocation15 + $0x18] sm:$0xf]
    %v730 = vld [vmem:[#allocation15 + $0x1c] sm:$0xf]
    %v731 = vld [vmem:[#allocation15 + $0x20] sm:$0xf]
    %v732 = vld [vmem:[#allocation15 + $0x24] sm:$0xf]
    %v733 = vld [vmem:[#allocation15 + $0x28] sm:$0xf]
    %v734 = vld [vmem:[#allocation15 + $0x2c] sm:$0xf]
    %v735 = vld [vmem:[#allocation15 + $0x30] sm:$0xf]
    %v736 = vld [vmem:[#allocation15 + $0x34] sm:$0xf]
    %v737 = vld [vmem:[#allocation15 + $0x38] sm:$0xf]
    %v738 = vld [vmem:[#allocation15 + $0x3c] sm:$0xf]
    %v739 = vld [vmem:[%s16] sm:$0x1]
    %v740 = vld [vmem:[%s18] sm:$0x1]
    %v743 = vunpack.c.l.b16 %v703
    %v744 = vunpack.c.l.b16 %v704
    %v745 = vpack.c.b16 %v744, %v743
    %747 = vmatpush.bf16.msra.mxu0 0
    %748 = vmatpush.bf16.msra.mxu0 0
    %749 = vmatpush.bf16.msra.mxu0 0
    %750 = vmatpush.bf16.msra.mxu0 0
    %751 = vmatpush.bf16.msra.mxu0 0
    %752 = vmatpush.bf16.msra.mxu0 0
    %753 = vmatpush.bf16.msra.mxu0 0
    %754 = vmatpush.bf16.msra.mxu0 %v745
    %755 = vmatmul.bf16.gmra.mxu0 %v255
    %v756 = vpop.f32.mrf.mxu0
    %v757 = vadd.f32 0.0, %v756
    %v758 = vpop.f32.mrf.mxu0
    %v759 = vadd.f32 0.0, %v758
    %760 = vdwg.mxu0
    %v761 = vpack.c.bf16 %v759, %v757
    %v763 = vperm.slane %v739, 0
    %v781 = vunpack.c.l.b16 %v707
    %v782 = vunpack.c.l.b16 %v708
    %v783 = vunpack.c.l.b16 %v709
    %v784 = vunpack.c.l.b16 %v710
    %v785 = vunpack.c.l.b16 %v711
    %v786 = vunpack.c.l.b16 %v712
    %v787 = vunpack.c.l.b16 %v713
    %v788 = vunpack.c.l.b16 %v714
    %v789 = vunpack.c.l.b16 %v715
    %v790 = vunpack.c.l.b16 %v716
    %v791 = vunpack.c.l.b16 %v717
    %v792 = vunpack.c.l.b16 %v718
    %v793 = vunpack.c.l.b16 %v719
    %v794 = vunpack.c.l.b16 %v720
    %v795 = vunpack.c.l.b16 %v721
    %v796 = vunpack.c.l.b16 %v722
    %v797 = vpack.c.b16 %v782, %v781
    %v798 = vpack.c.b16 %v784, %v783
    %v799 = vpack.c.b16 %v786, %v785
    %v800 = vpack.c.b16 %v788, %v787
    %v801 = vpack.c.b16 %v790, %v789
    %v802 = vpack.c.b16 %v792, %v791
    %v803 = vpack.c.b16 %v794, %v793
    %v804 = vpack.c.b16 %v796, %v795
    %813 = vmatpush.bf16.msra.mxu0 %v804
    %814 = vmatpush.bf16.msra.mxu0 %v803
    %815 = vmatpush.bf16.msra.mxu0 %v802
    %816 = vmatpush.bf16.msra.mxu0 %v801
    %817 = vmatpush.bf16.msra.mxu0 %v800
    %818 = vmatpush.bf16.msra.mxu0 %v799
    %819 = vmatpush.bf16.msra.mxu0 %v798
    %820 = vmatpush.bf16.msra.mxu0 %v797
    %821 = vmatmul.bf16.gmra.mxu0 %v761
    %v822 = vpop.f32.mrf.mxu0
    %v823 = vadd.f32 %v763, %v822
    %v824 = vpop.f32.mrf.mxu0
    %v825 = vadd.f32 %v763, %v824
    %826 = vdwg.mxu0
    %v827 = vmax.f32 %v823, 0.0
    %v828 = vmax.f32 %v825, 0.0
    %v829 = vpack.c.bf16 %v828, %v827
    %v831 = vperm.slane %v740, 0
    %v849 = vunpack.c.l.b16 %v723
    %v850 = vunpack.c.l.b16 %v724
    %v851 = vunpack.c.l.b16 %v725
    %v852 = vunpack.c.l.b16 %v726
    %v853 = vunpack.c.l.b16 %v727
    %v854 = vunpack.c.l.b16 %v728
    %v855 = vunpack.c.l.b16 %v729
    %v856 = vunpack.c.l.b16 %v730
    %v857 = vunpack.c.l.b16 %v731
    %v858 = vunpack.c.l.b16 %v732
    %v859 = vunpack.c.l.b16 %v733
    %v860 = vunpack.c.l.b16 %v734
    %v861 = vunpack.c.l.b16 %v735
    %v862 = vunpack.c.l.b16 %v736
    %v863 = vunpack.c.l.b16 %v737
    %v864 = vunpack.c.l.b16 %v738
    %v865 = vpack.c.b16 %v850, %v849
    %v866 = vpack.c.b16 %v852, %v851
    %v867 = vpack.c.b16 %v854, %v853
    %v868 = vpack.c.b16 %v856, %v855
    %v869 = vpack.c.b16 %v858, %v857
    %v870 = vpack.c.b16 %v860, %v859
    %v871 = vpack.c.b16 %v862, %v861
    %v872 = vpack.c.b16 %v864, %v863
    %881 = vmatpush.bf16.msra.mxu0 %v872
    %882 = vmatpush.bf16.msra.mxu0 %v871
    %883 = vmatpush.bf16.msra.mxu0 %v870
    %884 = vmatpush.bf16.msra.mxu0 %v869
    %885 = vmatpush.bf16.msra.mxu0 %v868
    %886 = vmatpush.bf16.msra.mxu0 %v867
    %887 = vmatpush.bf16.msra.mxu0 %v866
    %888 = vmatpush.bf16.msra.mxu0 %v865
    %889 = vmatmul.bf16.gmra.mxu0 %v829
    %v890 = vpop.f32.mrf.mxu0
    %v891 = vadd.f32 %v831, %v890
    %v892 = vpop.f32.mrf.mxu0
    %v893 = vadd.f32 %v831, %v892
    %894 = vdwg.mxu0
    %v895 = vmax.f32 %v891, 0.0
    %v896 = vmax.f32 %v893, 0.0
    %v897 = vmul.f32 %v895, %v202
    %v898 = vmul.f32 %v896, %v203
    %v899 = vadd.f32 %v897, %v898
    %v900 = vrot.slane %v899, 4
    %v901 = vadd.f32 %v899, %v900
    %v902 = vrot.slane %v901, 2
    %v903 = vadd.f32 %v901, %v902
    %v904 = vrot.slane %v903, 1
    %v905 = vadd.f32 %v903, %v904
    %v906 = vmul.f32 %v905, 0.0625
    %v907 = vsub.f32 %v895, %v906
    %v908 = vsub.f32 %v896, %v906
    %v909 = vmul.f32 %v907, %v907
    %v910 = vmul.f32 %v908, %v908
    %v911 = vmul.f32 %v909, %v202
    %v912 = vmul.f32 %v910, %v203
    %v913 = vadd.f32 %v911, %v912
    %v914 = vrot.slane %v913, 4
    %v915 = vadd.f32 %v913, %v914
    %v916 = vrot.slane %v915, 2
    %v917 = vadd.f32 %v915, %v916
    %v918 = vrot.slane %v917, 1
    %v919 = vadd.f32 %v917, %v918
    %v920 = vmul.f32 %v919, 0.0625
    %v921 = vadd.f32 %v920, 1e-05
    %v922 = vrsqrt.pop %v921
    %v923 = vmul.f32 %v922, %v921
    %v924 = vmul.f32 %v923, %v922
    %v925 = vmul.f32 0.5, %v924
    %v926 = vsub.f32 1.5, %v925
    %v927 = vmul.f32 %v922, %v926
    %vm928 = vweird.f32 %v921
    %vm929 = vweird.f32 %v922
    %vm930 = vmor %vm928, %vm929
    %v931 = vsel %vm930, %v922, %v927
    %v932 = vmul.f32 %v907, %v931
    %v933 = vmul.f32 %v908, %v931
    %v934 = vld [vmem:[%s19] sm:$0x1]
    %v936 = vperm.slane %v934, 0
    %v938 = vmul.f32 %v932, %v936
    %v939 = vmul.f32 %v933, %v936
    %v940 = vld [vmem:[%s20] sm:$0x1]
    %v942 = vperm.slane %v940, 0
    %v944 = vadd.f32 %v938, %v942
    %v945 = vadd.f32 %v939, %v942
    %v946 = vmul.f32 %v944, %v202
    %v947 = vmul.f32 %v945, %v203
    %v948 = vpack.c.bf16 %v946, %v946
    %v949 = vpack.c.bf16 %v947, %v947
    %950 = vst [vmem:[#allocation2 + $0x8] sm:$0xf] %v948
    %951 = vst [vmem:[#allocation2 + $0x14] sm:$0xf] %v949
    %v952 = vld [vmem:[%s2] sm:$0x1]
    %v953 = vld [vmem:[#allocation2] sm:$0xff]
    %v954 = vld [vmem:[#allocation2 + $0x8] sm:$0xf]
    %v955 = vld [vmem:[#allocation2 + $0xc] sm:$0xff]
    %v956 = vld [vmem:[#allocation2 + $0x14] sm:$0xf]
    %v961 = vunpack.c.l.b16 %v953
    %v962 = vunpack.c.h.b16 %v953
    %v963 = vunpack.c.l.b16 %v954
    %v964 = vunpack.c.l.b16 %v955
    %v965 = vunpack.c.h.b16 %v955
    %v966 = vunpack.c.l.b16 %v956
    %v967 = vpack.c.b16 %v964, %v961
    %v968 = vpack.c.b16 %v965, %v962
    %v969 = vpack.c.b16 %v966, %v963
    %v974 = vsel %vm253, %v952, 0
    %976 = vmatpush.bf16.msra.mxu0 0
    %977 = vmatpush.bf16.msra.mxu0 0
    %978 = vmatpush.bf16.msra.mxu0 0
    %979 = vmatpush.bf16.msra.mxu0 0
    %980 = vmatpush.bf16.msra.mxu0 0
    %981 = vmatpush.bf16.msra.mxu0 0
    %982 = vmatpush.bf16.msra.mxu0 0
    %983 = vmatpush.bf16.msra.mxu0 %v967
    %984 = vmatmul.bf16.gmra.mxu0 %v974
    %v985 = vpop.f32.mrf.mxu0
    %v986 = vadd.f32 0.0, %v985
    %v987 = vpop.f32.mrf.mxu0
    %988 = vdwg.mxu0
    %989 = vmatpush.bf16.msra.mxu0 0
    %990 = vmatpush.bf16.msra.mxu0 0
    %991 = vmatpush.bf16.msra.mxu0 0
    %992 = vmatpush.bf16.msra.mxu0 0
    %993 = vmatpush.bf16.msra.mxu0 0
    %994 = vmatpush.bf16.msra.mxu0 0
    %995 = vmatpush.bf16.msra.mxu0 0
    %996 = vmatpush.bf16.msra.mxu0 %v968
    %997 = vmatmul.bf16.gmra.mxu0 %v974
    %v998 = vpop.f32.mrf.mxu0
    %v999 = vadd.f32 0.0, %v998
    %v1000 = vpop.f32.mrf.mxu0
    %1001 = vdwg.mxu0
    %1002 = vmatpush.bf16.msra.mxu0 0
    %1003 = vmatpush.bf16.msra.mxu0 0
    %1004 = vmatpush.bf16.msra.mxu0 0
    %1005 = vmatpush.bf16.msra.mxu0 0
    %1006 = vmatpush.bf16.msra.mxu0 0
    %1007 = vmatpush.bf16.msra.mxu0 0
    %1008 = vmatpush.bf16.msra.mxu0 0
    %1009 = vmatpush.bf16.msra.mxu0 %v969
    %1010 = vmatmul.bf16.gmra.mxu0 %v974
    %v1011 = vpop.f32.mrf.mxu0
    %v1012 = vadd.f32 0.0, %v1011
    %v1013 = vpop.f32.mrf.mxu0
    %1014 = vdwg.mxu0
    %v1018 = vrot.slane %v999, 6
    %v1019 = vrot.slane %v1012, 4
    %vm1020 = vcmask 1041408
    %v1021 = vsel %vm1020, %v986, %v1018
    %vm1022 = vcmask 1043456
    %v1023 = vsel %vm1022, %v1021, %v1019
    %1025 = vst [vmem:[#allocation17] sm:$0x3f] %v1023
    // Predicated region
    $region118: #{tpu_custom_call.1} parent=1 // pred_check
      _
    $region119: #{tpu_custom_call.1} parent=1 // pred_check_branch
      %1027 = sbr.rel (0) target = $region121
    $region120: #{tpu_custom_call.1} parent=1 // pred_region
      %1029 = vsyncadd [#allocation5], 0
      %s1031 = sshll.u32 [#allocation17], 4
      %s1032 = int_to_ptr.vmem [resolvable:$true] %s1031
      %s1033 = sshll.u32 %s21, 4
      %s1034 = int_to_ptr.hbm [resolvable:$true] %s1033
      %1036 = dma.vmem_to_hbm [thread:$0]  %s1032, 96, %s1034, [#allocation5]
    $region121: #{tpu_custom_call.1} parent=1 // pred_fallthru
      _
    // Predicated region
    $region122: #{tpu_custom_call.1} parent=1 // pred_check
      _
    $region123: #{tpu_custom_call.1} parent=1 // pred_check_branch
      %1038 = sbr.rel (0) target = $region125
    $region124: #{tpu_custom_call.1} parent=1 // pred_region
      %1040 = dma.done [#allocation5], 96
    $region125: #{tpu_custom_call.1} parent=1 // pred_fallthru
      _
    %1041 = vsyncpa [#allocation4], 1
    %1042 = vsyncpa [#allocation7], 1
    %1043 = vsyncpa [#allocation10], 1
    %1044 = vsyncpa [#allocation13], 1
    %1045 = vsyncpa [#allocation16], 1
    %1046 = vsyncpa [#allocation5], 1

</llo_original>
